<compile_context>
chip_gen: v7x
topology: tpu7x:2x2x1
jax: 0.10.0
libtpu: 0.0.40
codegen_flags: <defaults>
</compile_context>

<pallas_src>
import jax
import jax.numpy as jnp
from jax.experimental import pallas as pl
from jax.experimental.pallas import tpu as pltpu

FEAT_C = 1024   # DenseNet feature channels (fc1 expects 1024 inputs)
HIDDEN = 512
EPS = 1e-5      # nn.BatchNorm1d default eps


def _round_up(x, m):
    return (x + m - 1) // m * m


def deepfake_head_kernel(x_ref, w1_ref, b1_ref, w2_ref, b2_ref, o_ref):
    # x_ref: (BM, HW, C) bf16 tile of the backbone feature map.
    # AdaptiveAvgPool2d((1,1)) == mean over HW; the 1/HW factor is folded into
    # w1 in the wrapper, so the pool is a plain sum with f32 accumulation.
    pooled = jnp.sum(x_ref[...].astype(jnp.float32), axis=1)          # (BM, C) f32

    # fc1 (with 1/HW folded in): bf16 operands on the MXU, f32 accumulation.
    h = jnp.dot(pooled.astype(jnp.bfloat16), w1_ref[...],
                preferred_element_type=jnp.float32) + b1_ref[...]     # (BM, 512)
    h = jnp.maximum(h, 0.0)                                           # ReLU (f32 VPU)

    # Eval-mode BatchNorm1d + Dropout(identity) + Linear(512,1) are folded into
    # w2_ref / b2_ref in the wrapper; the N=1 contraction is a VPU multiply +
    # lane reduce instead of a 1-lane MXU matmul.
    logit = jnp.sum(h * w2_ref[...], axis=-1, keepdims=True) + b2_ref[...]  # (BM, 1)
    o_ref[...] = jax.nn.sigmoid(logit)


def deepfake_head(x_feat, params, *, block_b=128):
    """x_feat: (B, HW, C) feature map (output of the DenseNet backbone)."""
    B, HW, C = x_feat.shape
    assert C == FEAT_C, C

    # ---- wrapper-side folding (all in f32) --------------------------------
    # BN(eval):  y = (h - mean) * gamma / sqrt(var + eps) + beta
    # folded into the output Linear:  y @ w2 + b2 == h @ w2' + b2'
    scale = params["gamma"] * jax.lax.rsqrt(params["running_var"] + EPS)  # (1, H)
    w2_vec = (params["w2"][:, 0] * scale[0]).reshape(1, HIDDEN)           # (1, H)
    shift = params["beta"] - params["running_mean"] * scale               # (1, H)
    b2_fold = (params["b2"] + shift @ params["w2"]).astype(jnp.float32)   # (1, 1)
    # 1/HW of the average pool folded into fc1; stream x / w1 as bf16.
    w1_bf16 = (params["w1"] / float(HW)).astype(jnp.bfloat16)             # (C, H)
    b1 = params["b1"].astype(jnp.float32)
    w2_vec = w2_vec.astype(jnp.float32)

    # ---- batch tiling ------------------------------------------------------
    bm = int(min(block_b, _round_up(B, 8)))
    n_tiles = pl.cdiv(B, bm)
    b_pad = n_tiles * bm
    x = x_feat.astype(jnp.bfloat16)
    if b_pad != B:
        x = jnp.pad(x, ((0, b_pad - B), (0, 0), (0, 0)))

    # VMEM budget sized to the real footprint (double-buffered x tiles +
    # resident weights + outputs) with headroom; capped so it fits v7x (64 MiB).
    x_tile_bytes = bm * HW * C * 2                     # bf16 tile
    weight_bytes = C * HIDDEN * 2 + 3 * HIDDEN * 4 + 4
    out_bytes = 2 * bm * 4
    vmem_limit = 2 * x_tile_bytes + weight_bytes + out_bytes + (8 << 20)
    vmem_limit = int(min(max(vmem_limit, 16 << 20), 48 << 20))

    out = pl.pallas_call(
        deepfake_head_kernel,
        out_shape=jax.ShapeDtypeStruct((b_pad, 1), jnp.float32),
        grid=(n_tiles,),
        in_specs=[
            pl.BlockSpec((bm, HW, C), lambda i: (i, 0, 0)),       # streamed tiles
            pl.BlockSpec((FEAT_C, HIDDEN), lambda i: (0, 0)),     # VMEM-resident
            pl.BlockSpec((1, HIDDEN), lambda i: (0, 0)),
            pl.BlockSpec((1, HIDDEN), lambda i: (0, 0)),
            pl.BlockSpec((1, 1), lambda i: (0, 0)),
        ],
        out_specs=pl.BlockSpec((bm, 1), lambda i: (i, 0)),
        compiler_params=pltpu.CompilerParams(
            dimension_semantics=("parallel",),
            vmem_limit_bytes=vmem_limit,
        ),
    )(x, w1_bf16, b1, w2_vec, b2_fold)

    return out[:B]


def init_params(key):
    k1, k2, k3, k4, k5, k6 = jax.random.split(key, 6)
    return {
        # Linear(1024, 512): stored transposed as (in, out)
        "w1": jax.random.normal(k1, (FEAT_C, HIDDEN), jnp.float32) * 0.02,
        "b1": jax.random.normal(k2, (1, HIDDEN), jnp.float32) * 0.02,
        # BatchNorm1d(512) affine + running stats (eval mode)
        "gamma": jnp.ones((1, HIDDEN), jnp.float32),
        "beta": jnp.zeros((1, HIDDEN), jnp.float32),
        "running_mean": jax.random.normal(k3, (1, HIDDEN), jnp.float32) * 0.1,
        "running_var": jnp.abs(jax.random.normal(k4, (1, HIDDEN), jnp.float32)) + 0.5,
        # Linear(512, 1): stored transposed as (in, out)
        "w2": jax.random.normal(k5, (HIDDEN, 1), jnp.float32) * 0.02,
        "b2": jax.random.normal(k6, (1, 1), jnp.float32) * 0.02,
    }


def reference(x_feat, p):
    pooled = jnp.mean(x_feat, axis=1)
    h = jnp.maximum(pooled @ p["w1"] + p["b1"], 0.0)
    h = (h - p["running_mean"]) / jnp.sqrt(p["running_var"] + EPS) * p["gamma"] + p["beta"]
    return jax.nn.sigmoid(h @ p["w2"] + p["b2"])


if __name__ == "__main__":
    key = jax.random.PRNGKey(0)
    kx, kp = jax.random.split(key)

    B, H, W = 2, 4, 4  # small spatial extent of the backbone feature map
    # Backbone output feature map, NCHW in PyTorch -> (B, C, H, W)
    x_nchw = jax.random.normal(kx, (B, FEAT_C, H, W), jnp.float32)
    # layout: NCHW -> (B, H*W, C) so channels sit on the lane axis
    x_feat = jnp.transpose(x_nchw, (0, 2, 3, 1)).reshape(B, H * W, FEAT_C)

    params = init_params(kp)

    out = jax.block_until_ready(deepfake_head(x_feat, params))
    ref = reference(x_feat, params)

    assert out.shape == (B, 1), out.shape
    # bf16 feature/weight stream with f32 accumulation -> small numerical delta
    max_err = float(jnp.max(jnp.abs(out - ref)))
    assert max_err < 1.5e-2, (max_err, out, ref)

    print("KERNEL_OK")
</pallas_src>

<mosaic_0001>
module attributes {stable_mosaic.version = 11 : i64} {
  func.func @deepfake_head_kernel(%arg0: i32, %arg1: memref<8x16x1024xbf16, #tpu.memory_space<vmem>>, %arg2: memref<1024x512xbf16, #tpu.memory_space<vmem>>, %arg3: memref<1x512xf32, #tpu.memory_space<vmem>>, %arg4: memref<1x512xf32, #tpu.memory_space<vmem>>, %arg5: memref<1x1xf32, #tpu.memory_space<vmem>>, %arg6: memref<8x1xf32, #tpu.memory_space<vmem>>) attributes {dimension_semantics = [#tpu.dimension_semantics<parallel>], iteration_bounds = array<i64: 1>, scalar_prefetch = 0 : i64, scratch_operands = 0 : i64, tpu.core_type = #tpu.core_type<tc>, window_params = [{transform_indices = @transform_0, window_bounds = array<i64: 8, 16, 1024>}, {pipeline_mode = #tpu.pipeline_mode<synchronous>, transform_indices = @transform_1, window_bounds = array<i64: 1024, 512>}, {pipeline_mode = #tpu.pipeline_mode<synchronous>, transform_indices = @transform_2, window_bounds = array<i64: 1, 512>}, {pipeline_mode = #tpu.pipeline_mode<synchronous>, transform_indices = @transform_3, window_bounds = array<i64: 1, 512>}, {pipeline_mode = #tpu.pipeline_mode<synchronous>, transform_indices = @transform_4, window_bounds = array<i64: 1, 1>}, {transform_indices = @transform_5, window_bounds = array<i64: 8, 1>}]} {
    %c0 = arith.constant 0 : index
    %c0_0 = arith.constant 0 : index
    %c0_1 = arith.constant 0 : index
    %0 = vector.load %arg1[%c0, %c0_0, %c0_1] : memref<8x16x1024xbf16, #tpu.memory_space<vmem>>, vector<8x16x1024xbf16>
    %1 = arith.extf %0 : vector<8x16x1024xbf16> to vector<8x16x1024xf32>
    %cst = arith.constant dense<0.000000e+00> : vector<8x1024xf32>
    %2 = vector.multi_reduction <add>, %1, %cst [1] : vector<8x16x1024xf32> to vector<8x1024xf32>
    %3 = arith.truncf %2 : vector<8x1024xf32> to vector<8x1024xbf16>
    %c0_2 = arith.constant 0 : index
    %c0_3 = arith.constant 0 : index
    %4 = vector.load %arg2[%c0_2, %c0_3] : memref<1024x512xbf16, #tpu.memory_space<vmem>>, vector<1024x512xbf16>
    %cst_4 = arith.constant dense<0.000000e+00> : vector<8x512xf32>
    %5 = tpu.matmul %3, %4, %cst_4 {dimension_numbers = #tpu.dot_dimension_numbers<[1], [0], [0], [1], [0, 0, 1, 1], [], []>} : vector<8x1024xbf16>, vector<1024x512xbf16>, vector<8x512xf32> -> vector<8x512xf32>
    %c0_5 = arith.constant 0 : index
    %c0_6 = arith.constant 0 : index
    %6 = vector.load %arg3[%c0_5, %c0_6] : memref<1x512xf32, #tpu.memory_space<vmem>>, vector<1x512xf32>
    %7 = vector.broadcast %6 : vector<1x512xf32> to vector<8x512xf32>
    %8 = arith.addf %5, %7 : vector<8x512xf32>
    %cst_7 = arith.constant 0.000000e+00 : f32
    %9 = vector.broadcast %cst_7 : f32 to vector<8x512xf32>
    %10 = arith.maximumf %8, %9 : vector<8x512xf32>
    %c0_8 = arith.constant 0 : index
    %c0_9 = arith.constant 0 : index
    %11 = vector.load %arg4[%c0_8, %c0_9] : memref<1x512xf32, #tpu.memory_space<vmem>>, vector<1x512xf32>
    %12 = vector.broadcast %11 : vector<1x512xf32> to vector<8x512xf32>
    %13 = arith.mulf %10, %12 : vector<8x512xf32>
    %cst_10 = arith.constant dense<0.000000e+00> : vector<8xf32>
    %14 = vector.multi_reduction <add>, %13, %cst_10 [1] : vector<8x512xf32> to vector<8xf32>
    %15 = vector.shape_cast %14 : vector<8xf32> to vector<8x1xf32>
    %c0_11 = arith.constant 0 : index
    %c0_12 = arith.constant 0 : index
    %16 = vector.load %arg5[%c0_11, %c0_12] : memref<1x1xf32, #tpu.memory_space<vmem>>, vector<1x1xf32>
    %17 = vector.broadcast %16 : vector<1x1xf32> to vector<8x1xf32>
    %18 = arith.addf %15, %17 : vector<8x1xf32>
    %19 = arith.negf %18 : vector<8x1xf32>
    %20 = math.exp %19 : vector<8x1xf32>
    %cst_13 = arith.constant 1.000000e+00 : f32
    %21 = vector.broadcast %cst_13 : f32 to vector<8x1xf32>
    %22 = arith.addf %21, %20 : vector<8x1xf32>
    %23 = arith.divf %21, %22 : vector<8x1xf32>
    %c0_14 = arith.constant 0 : index
    %c0_15 = arith.constant 0 : index
    %24 = vector.load %arg6[%c0_14, %c0_15] : memref<8x1xf32, #tpu.memory_space<vmem>>, vector<8x1xf32>
    tpu.vector_store %arg6[%c0_14, %c0_15], %23 {strides = array<i32>} : memref<8x1xf32, #tpu.memory_space<vmem>>, vector<8x1xf32>,
    return
  }
  func.func @transform_0(%arg0: i32) -> (i32, i32, i32) {
    %c0_i32 = arith.constant 0 : i32
    %c0_i32_0 = arith.constant 0 : i32
    %c0_i32_1 = arith.constant 0 : i32
    return %arg0, %c0_i32, %c0_i32_0 : i32, i32, i32
  }
  func.func @transform_1(%arg0: i32) -> (i32, i32) {
    %c0_i32 = arith.constant 0 : i32
    %c0_i32_0 = arith.constant 0 : i32
    %c0_i32_1 = arith.constant 0 : i32
    return %c0_i32, %c0_i32_0 : i32, i32
  }
  func.func @transform_2(%arg0: i32) -> (i32, i32) {
    %c0_i32 = arith.constant 0 : i32
    %c0_i32_0 = arith.constant 0 : i32
    %c0_i32_1 = arith.constant 0 : i32
    return %c0_i32, %c0_i32_0 : i32, i32
  }
  func.func @transform_3(%arg0: i32) -> (i32, i32) {
    %c0_i32 = arith.constant 0 : i32
    %c0_i32_0 = arith.constant 0 : i32
    %c0_i32_1 = arith.constant 0 : i32
    return %c0_i32, %c0_i32_0 : i32, i32
  }
  func.func @transform_4(%arg0: i32) -> (i32, i32) {
    %c0_i32 = arith.constant 0 : i32
    %c0_i32_0 = arith.constant 0 : i32
    %c0_i32_1 = arith.constant 0 : i32
    return %c0_i32, %c0_i32_0 : i32, i32
  }
  func.func @transform_5(%arg0: i32) -> (i32, i32) {
    %c0_i32 = arith.constant 0 : i32
    %c0_i32_0 = arith.constant 0 : i32
    return %arg0, %c0_i32 : i32, i32
  }
}

</mosaic_0001>

<llo_original>
// kernel: tpu_custom_call.1
$region0: #{tpu_custom_call.1}
  #allocation0 [shape = 'u32[]', space=smem, size = 0x4, offset = 0x4, fixed_abs, tag = 'smem constant byte address 0x4 - core index']
  #allocation1 [shape = 'u32[144,128]{1,0:T(1,128)}', space=vmem, size = 0x12000, scoped, tag = 'internal scratch']
  #allocation2 [shape = 'f32[1,1]{1,0:T(1,128)S(1)}', space=vmem, size = 0x200, scoped, tag = 'scoped memory for tpu_custom_call.1']
  %s0 = inlined_call_operand.hbm [shape: bf16[8,16,1024], index: 0, kind: input, shape index: {}]
  %s1 = inlined_call_operand.hbm [shape: bf16[1024,512], index: 1, kind: input, shape index: {}]
  %s2 = inlined_call_operand.vmem [shape: f32[1,512], index: 2, kind: input, shape index: {}]
  %s3 = inlined_call_operand.vmem [shape: f32[1,512], index: 3, kind: input, shape index: {}]
  %s4 = inlined_call_operand.<no memory space> [shape: f32[1,1], index: 4, kind: input, shape index: {}]
  %s5 = inlined_call_operand.vmem [shape: f32[8,1], index: 5, kind: output, shape index: {}]
  %s6 = sld [smem:[#allocation0]]
  $region38: #{tpu_custom_call.1} parent=0
    _
  %s8 = ssub.s32 1, %s6
  %s9 = scalar_select 0, %s8, %s6
  %v10 = vstv %s4
  %11 = vst [vmem:[#allocation2] sm:$0x1] %v10
  $region1: #{tpu_custom_call.1} parent=0
    #allocation3 [shape = 'u8[262144]{0}', space=vmem, size = 0x40000, scoped, tag = 'input window, operand 0, single buffered']
    #allocation4 [shape = 's32[1]{0}', space=sflag, size = 0x4, scoped, tag = 'scoped memory for tpu_custom_call.1']
    #allocation5 [shape = 'u8[1048576]{0}', space=vmem, size = 0x100000, scoped, tag = 'input window, operand 1, single buffered']
    #allocation6 [shape = 's32[1]{0}', space=sflag, size = 0x4, scoped, tag = 'scoped memory for tpu_custom_call.1']
    %12 = vsyncpa [#allocation4], 0
    %13 = vsyncpa [#allocation6], 0
    // Predicated region
    $region2: #{tpu_custom_call.1} parent=1 // pred_check
      _
    $region3: #{tpu_custom_call.1} parent=1 // pred_check_branch
      %15 = sbr.rel (0) target = $region5
    $region4: #{tpu_custom_call.1} parent=1 // pred_region
      %s17 = ssub.s32 8192, 8192
      %18 = vsyncadd [#allocation4], %s17
      %s19 = sshll.u32 [#allocation3], 4
      %s20 = int_to_ptr.vmem [resolvable:$true] %s19
      %25 = dma.hbm_to_vmem [thread:$0]  %s0, 8192, %s20, [#allocation4], 512, 512, 32
    $region5: #{tpu_custom_call.1} parent=1 // pred_fallthru
      _
    // Predicated region
    $region6: #{tpu_custom_call.1} parent=1 // pred_check
      _
    $region7: #{tpu_custom_call.1} parent=1 // pred_check_branch
      %27 = sbr.rel (0) target = $region9
    $region8: #{tpu_custom_call.1} parent=1 // pred_region
      %s29 = ssub.s32 32768, 32768
      %30 = vsyncadd [#allocation6], %s29
      %s31 = sshll.u32 [#allocation5], 4
      %s32 = int_to_ptr.vmem [resolvable:$true] %s31
      %37 = dma.hbm_to_vmem [thread:$0]  %s1, 32768, %s32, [#allocation6], 256, 256, 16
    $region9: #{tpu_custom_call.1} parent=1 // pred_fallthru
      _
    // Predicated region
    $region10: #{tpu_custom_call.1} parent=1 // pred_check
      _
    $region11: #{tpu_custom_call.1} parent=1 // pred_check_branch
      %39 = sbr.rel (0) target = $region13
    $region12: #{tpu_custom_call.1} parent=1 // pred_region
      _
    $region13: #{tpu_custom_call.1} parent=1 // pred_fallthru
      _
    // Predicated region
    $region14: #{tpu_custom_call.1} parent=1 // pred_check
      _
    $region15: #{tpu_custom_call.1} parent=1 // pred_check_branch
      %41 = sbr.rel (0) target = $region17
    $region16: #{tpu_custom_call.1} parent=1 // pred_region
      _
    $region17: #{tpu_custom_call.1} parent=1 // pred_fallthru
      _
    // Predicated region
    $region18: #{tpu_custom_call.1} parent=1 // pred_check
      _
    $region19: #{tpu_custom_call.1} parent=1 // pred_check_branch
      %43 = sbr.rel (0) target = $region21
    $region20: #{tpu_custom_call.1} parent=1 // pred_region
      _
    $region21: #{tpu_custom_call.1} parent=1 // pred_fallthru
      _
    // Predicated region
    $region22: #{tpu_custom_call.1} parent=1 // pred_check
      _
    $region23: #{tpu_custom_call.1} parent=1 // pred_check_branch
      %45 = sbr.rel (0) target = $region25
    $region24: #{tpu_custom_call.1} parent=1 // pred_region
      %46 = dma.done [#allocation4], 8192
    $region25: #{tpu_custom_call.1} parent=1 // pred_fallthru
      _
    // Predicated region
    $region26: #{tpu_custom_call.1} parent=1 // pred_check
      _
    $region27: #{tpu_custom_call.1} parent=1 // pred_check_branch
      %48 = sbr.rel (0) target = $region29
    $region28: #{tpu_custom_call.1} parent=1 // pred_region
      %49 = dma.done [#allocation6], 32768
    $region29: #{tpu_custom_call.1} parent=1 // pred_fallthru
      _
    %v50 = vld [vmem:[#allocation3] sm:$0xff]
    %v51 = vld [vmem:[#allocation3 + $0x8] sm:$0xff]
    %v52 = vld [vmem:[#allocation3 + $0x10] sm:$0xff]
    %v53 = vld [vmem:[#allocation3 + $0x18] sm:$0xff]
    %v54 = vld [vmem:[#allocation3 + $0x20] sm:$0xff]
    %v55 = vld [vmem:[#allocation3 + $0x28] sm:$0xff]
    %v56 = vld [vmem:[#allocation3 + $0x30] sm:$0xff]
    %v57 = vld [vmem:[#allocation3 + $0x38] sm:$0xff]
    %v58 = vld [vmem:[#allocation3 + $0x40] sm:$0xff]
    %v59 = vld [vmem:[#allocation3 + $0x48] sm:$0xff]
    %v60 = vld [vmem:[#allocation3 + $0x50] sm:$0xff]
    %v61 = vld [vmem:[#allocation3 + $0x58] sm:$0xff]
    %v62 = vld [vmem:[#allocation3 + $0x60] sm:$0xff]
    %v63 = vld [vmem:[#allocation3 + $0x68] sm:$0xff]
    %v64 = vld [vmem:[#allocation3 + $0x70] sm:$0xff]
    %v65 = vld [vmem:[#allocation3 + $0x78] sm:$0xff]
    %v66 = vld [vmem:[#allocation3 + $0x80] sm:$0xff]
    %v67 = vld [vmem:[#allocation3 + $0x88] sm:$0xff]
    %v68 = vld [vmem:[#allocation3 + $0x90] sm:$0xff]
    %v69 = vld [vmem:[#allocation3 + $0x98] sm:$0xff]
    %v70 = vld [vmem:[#allocation3 + $0xa0] sm:$0xff]
    %v71 = vld [vmem:[#allocation3 + $0xa8] sm:$0xff]
    %v72 = vld [vmem:[#allocation3 + $0xb0] sm:$0xff]
    %v73 = vld [vmem:[#allocation3 + $0xb8] sm:$0xff]
    %v74 = vld [vmem:[#allocation3 + $0xc0] sm:$0xff]
    %v75 = vld [vmem:[#allocation3 + $0xc8] sm:$0xff]
    %v76 = vld [vmem:[#allocation3 + $0xd0] sm:$0xff]
    %v77 = vld [vmem:[#allocation3 + $0xd8] sm:$0xff]
    %v78 = vld [vmem:[#allocation3 + $0xe0] sm:$0xff]
    %v79 = vld [vmem:[#allocation3 + $0xe8] sm:$0xff]
    %v80 = vld [vmem:[#allocation3 + $0xf0] sm:$0xff]
    %v81 = vld [vmem:[#allocation3 + $0xf8] sm:$0xff]
    %v82 = vld [vmem:[#allocation3 + $0x100] sm:$0xff]
    %v83 = vld [vmem:[#allocation3 + $0x108] sm:$0xff]
    %v84 = vld [vmem:[#allocation3 + $0x110] sm:$0xff]
    %v85 = vld [vmem:[#allocation3 + $0x118] sm:$0xff]
    %v86 = vld [vmem:[#allocation3 + $0x120] sm:$0xff]
    %v87 = vld [vmem:[#allocation3 + $0x128] sm:$0xff]
    %v88 = vld [vmem:[#allocation3 + $0x130] sm:$0xff]
    %v89 = vld [vmem:[#allocation3 + $0x138] sm:$0xff]
    %v90 = vld [vmem:[#allocation3 + $0x140] sm:$0xff]
    %v91 = vld [vmem:[#allocation3 + $0x148] sm:$0xff]
    %v92 = vld [vmem:[#allocation3 + $0x150] sm:$0xff]
    %v93 = vld [vmem:[#allocation3 + $0x158] sm:$0xff]
    %v94 = vld [vmem:[#allocation3 + $0x160] sm:$0xff]
    %v95 = vld [vmem:[#allocation3 + $0x168] sm:$0xff]
    %v96 = vld [vmem:[#allocation3 + $0x170] sm:$0xff]
    %v97 = vld [vmem:[#allocation3 + $0x178] sm:$0xff]
    %v98 = vld [vmem:[#allocation3 + $0x180] sm:$0xff]
    %v99 = vld [vmem:[#allocation3 + $0x188] sm:$0xff]
    %v100 = vld [vmem:[#allocation3 + $0x190] sm:$0xff]
    %v101 = vld [vmem:[#allocation3 + $0x198] sm:$0xff]
    %v102 = vld [vmem:[#allocation3 + $0x1a0] sm:$0xff]
    %v103 = vld [vmem:[#allocation3 + $0x1a8] sm:$0xff]
    %v104 = vld [vmem:[#allocation3 + $0x1b0] sm:$0xff]
    %v105 = vld [vmem:[#allocation3 + $0x1b8] sm:$0xff]
    %v106 = vld [vmem:[#allocation3 + $0x1c0] sm:$0xff]
    %v107 = vld [vmem:[#allocation3 + $0x1c8] sm:$0xff]
    %v108 = vld [vmem:[#allocation3 + $0x1d0] sm:$0xff]
    %v109 = vld [vmem:[#allocation3 + $0x1d8] sm:$0xff]
    %v110 = vld [vmem:[#allocation3 + $0x1e0] sm:$0xff]
    %v111 = vld [vmem:[#allocation3 + $0x1e8] sm:$0xff]
    %v112 = vld [vmem:[#allocation3 + $0x1f0] sm:$0xff]
    %v113 = vld [vmem:[#allocation3 + $0x1f8] sm:$0xff]
    %v114 = vunpack.c.l.bf16 %v50
    %v115 = vunpack.c.h.bf16 %v50
    %v116 = vunpack.c.l.bf16 %v51
    %v117 = vunpack.c.h.bf16 %v51
    %v118 = vunpack.c.l.bf16 %v52
    %v119 = vunpack.c.h.bf16 %v52
    %v120 = vunpack.c.l.bf16 %v53
    %v121 = vunpack.c.h.bf16 %v53
    %v122 = vunpack.c.l.bf16 %v54
    %v123 = vunpack.c.h.bf16 %v54
    %v124 = vunpack.c.l.bf16 %v55
    %v125 = vunpack.c.h.bf16 %v55
    %v126 = vunpack.c.l.bf16 %v56
    %v127 = vunpack.c.h.bf16 %v56
    %v128 = vunpack.c.l.bf16 %v57
    %v129 = vunpack.c.h.bf16 %v57
    %v130 = vunpack.c.l.bf16 %v58
    %v131 = vunpack.c.h.bf16 %v58
    %v132 = vunpack.c.l.bf16 %v59
    %v133 = vunpack.c.h.bf16 %v59
    %v134 = vunpack.c.l.bf16 %v60
    %v135 = vunpack.c.h.bf16 %v60
    %v136 = vunpack.c.l.bf16 %v61
    %v137 = vunpack.c.h.bf16 %v61
    %v138 = vunpack.c.l.bf16 %v62
    %v139 = vunpack.c.h.bf16 %v62
    %v140 = vunpack.c.l.bf16 %v63
    %v141 = vunpack.c.h.bf16 %v63
    %v142 = vunpack.c.l.bf16 %v64
    %v143 = vunpack.c.h.bf16 %v64
    %v144 = vunpack.c.l.bf16 %v65
    %v145 = vunpack.c.h.bf16 %v65
    %v146 = vunpack.c.l.bf16 %v66
    %v147 = vunpack.c.h.bf16 %v66
    %v148 = vunpack.c.l.bf16 %v67
    %v149 = vunpack.c.h.bf16 %v67
    %v150 = vunpack.c.l.bf16 %v68
    %v151 = vunpack.c.h.bf16 %v68
    %v152 = vunpack.c.l.bf16 %v69
    %v153 = vunpack.c.h.bf16 %v69
    %v154 = vunpack.c.l.bf16 %v70
    %v155 = vunpack.c.h.bf16 %v70
    %v156 = vunpack.c.l.bf16 %v71
    %v157 = vunpack.c.h.bf16 %v71
    %v158 = vunpack.c.l.bf16 %v72
    %v159 = vunpack.c.h.bf16 %v72
    %v160 = vunpack.c.l.bf16 %v73
    %v161 = vunpack.c.h.bf16 %v73
    %v162 = vunpack.c.l.bf16 %v74
    %v163 = vunpack.c.h.bf16 %v74
    %v164 = vunpack.c.l.bf16 %v75
    %v165 = vunpack.c.h.bf16 %v75
    %v166 = vunpack.c.l.bf16 %v76
    %v167 = vunpack.c.h.bf16 %v76
    %v168 = vunpack.c.l.bf16 %v77
    %v169 = vunpack.c.h.bf16 %v77
    %v170 = vunpack.c.l.bf16 %v78
    %v171 = vunpack.c.h.bf16 %v78
    %v172 = vunpack.c.l.bf16 %v79
    %v173 = vunpack.c.h.bf16 %v79
    %v174 = vunpack.c.l.bf16 %v80
    %v175 = vunpack.c.h.bf16 %v80
    %v176 = vunpack.c.l.bf16 %v81
    %v177 = vunpack.c.h.bf16 %v81
    %v178 = vunpack.c.l.bf16 %v82
    %v179 = vunpack.c.h.bf16 %v82
    %v180 = vunpack.c.l.bf16 %v83
    %v181 = vunpack.c.h.bf16 %v83
    %v182 = vunpack.c.l.bf16 %v84
    %v183 = vunpack.c.h.bf16 %v84
    %v184 = vunpack.c.l.bf16 %v85
    %v185 = vunpack.c.h.bf16 %v85
    %v186 = vunpack.c.l.bf16 %v86
    %v187 = vunpack.c.h.bf16 %v86
    %v188 = vunpack.c.l.bf16 %v87
    %v189 = vunpack.c.h.bf16 %v87
    %v190 = vunpack.c.l.bf16 %v88
    %v191 = vunpack.c.h.bf16 %v88
    %v192 = vunpack.c.l.bf16 %v89
    %v193 = vunpack.c.h.bf16 %v89
    %v194 = vunpack.c.l.bf16 %v90
    %v195 = vunpack.c.h.bf16 %v90
    %v196 = vunpack.c.l.bf16 %v91
    %v197 = vunpack.c.h.bf16 %v91
    %v198 = vunpack.c.l.bf16 %v92
    %v199 = vunpack.c.h.bf16 %v92
    %v200 = vunpack.c.l.bf16 %v93
    %v201 = vunpack.c.h.bf16 %v93
    %v202 = vunpack.c.l.bf16 %v94
    %v203 = vunpack.c.h.bf16 %v94
    %v204 = vunpack.c.l.bf16 %v95
    %v205 = vunpack.c.h.bf16 %v95
    %v206 = vunpack.c.l.bf16 %v96
    %v207 = vunpack.c.h.bf16 %v96
    %v208 = vunpack.c.l.bf16 %v97
    %v209 = vunpack.c.h.bf16 %v97
    %v210 = vunpack.c.l.bf16 %v98
    %v211 = vunpack.c.h.bf16 %v98
    %v212 = vunpack.c.l.bf16 %v99
    %v213 = vunpack.c.h.bf16 %v99
    %v214 = vunpack.c.l.bf16 %v100
    %v215 = vunpack.c.h.bf16 %v100
    %v216 = vunpack.c.l.bf16 %v101
    %v217 = vunpack.c.h.bf16 %v101
    %v218 = vunpack.c.l.bf16 %v102
    %v219 = vunpack.c.h.bf16 %v102
    %v220 = vunpack.c.l.bf16 %v103
    %v221 = vunpack.c.h.bf16 %v103
    %v222 = vunpack.c.l.bf16 %v104
    %v223 = vunpack.c.h.bf16 %v104
    %v224 = vunpack.c.l.bf16 %v105
    %v225 = vunpack.c.h.bf16 %v105
    %v226 = vunpack.c.l.bf16 %v106
    %v227 = vunpack.c.h.bf16 %v106
    %v228 = vunpack.c.l.bf16 %v107
    %v229 = vunpack.c.h.bf16 %v107
    %v230 = vunpack.c.l.bf16 %v108
    %v231 = vunpack.c.h.bf16 %v108
    %v232 = vunpack.c.l.bf16 %v109
    %v233 = vunpack.c.h.bf16 %v109
    %v234 = vunpack.c.l.bf16 %v110
    %v235 = vunpack.c.h.bf16 %v110
    %v236 = vunpack.c.l.bf16 %v111
    %v237 = vunpack.c.h.bf16 %v111
    %v238 = vunpack.c.l.bf16 %v112
    %v239 = vunpack.c.h.bf16 %v112
    %v240 = vunpack.c.l.bf16 %v113
    %v241 = vunpack.c.h.bf16 %v113
    %v242 = vadd.f32 %v114, %v122
    %v243 = vrot.slane %v242, 4
    %v244 = vadd.f32 %v242, %v243
    %v245 = vrot.slane %v244, 2
    %v246 = vadd.f32 %v244, %v245
    %v247 = vrot.slane %v246, 1
    %v248 = vadd.f32 %v246, %v247
    %v249 = vadd.f32 %v115, %v123
    %v250 = vrot.slane %v249, 4
    %v251 = vadd.f32 %v249, %v250
    %v252 = vrot.slane %v251, 2
    %v253 = vadd.f32 %v251, %v252
    %v254 = vrot.slane %v253, 1
    %v255 = vadd.f32 %v253, %v254
    %v256 = vadd.f32 %v116, %v124
    %v257 = vrot.slane %v256, 4
    %v258 = vadd.f32 %v256, %v257
    %v259 = vrot.slane %v258, 2
    %v260 = vadd.f32 %v258, %v259
    %v261 = vrot.slane %v260, 1
    %v262 = vadd.f32 %v260, %v261
    %v263 = vadd.f32 %v117, %v125
    %v264 = vrot.slane %v263, 4
    %v265 = vadd.f32 %v263, %v264
    %v266 = vrot.slane %v265, 2
    %v267 = vadd.f32 %v265, %v266
    %v268 = vrot.slane %v267, 1
    %v269 = vadd.f32 %v267, %v268
    %v270 = vadd.f32 %v118, %v126
    %v271 = vrot.slane %v270, 4
    %v272 = vadd.f32 %v270, %v271
    %v273 = vrot.slane %v272, 2
    %v274 = vadd.f32 %v272, %v273
    %v275 = vrot.slane %v274, 1
    %v276 = vadd.f32 %v274, %v275
    %v277 = vadd.f32 %v119, %v127
    %v278 = vrot.slane %v277, 4
    %v279 = vadd.f32 %v277, %v278
    %v280 = vrot.slane %v279, 2
    %v281 = vadd.f32 %v279, %v280
    %v282 = vrot.slane %v281, 1
    %v283 = vadd.f32 %v281, %v282
    %v284 = vadd.f32 %v120, %v128
    %v285 = vrot.slane %v284, 4
    %v286 = vadd.f32 %v284, %v285
    %v287 = vrot.slane %v286, 2
    %v288 = vadd.f32 %v286, %v287
    %v289 = vrot.slane %v288, 1
    %v290 = vadd.f32 %v288, %v289
    %v291 = vadd.f32 %v121, %v129
    %v292 = vrot.slane %v291, 4
    %v293 = vadd.f32 %v291, %v292
    %v294 = vrot.slane %v293, 2
    %v295 = vadd.f32 %v293, %v294
    %v296 = vrot.slane %v295, 1
    %v297 = vadd.f32 %v295, %v296
    %v298 = vadd.f32 %v130, %v138
    %v299 = vrot.slane %v298, 4
    %v300 = vadd.f32 %v298, %v299
    %v301 = vrot.slane %v300, 2
    %v302 = vadd.f32 %v300, %v301
    %v303 = vrot.slane %v302, 1
    %v304 = vadd.f32 %v302, %v303
    %v305 = vadd.f32 %v131, %v139
    %v306 = vrot.slane %v305, 4
    %v307 = vadd.f32 %v305, %v306
    %v308 = vrot.slane %v307, 2
    %v309 = vadd.f32 %v307, %v308
    %v310 = vrot.slane %v309, 1
    %v311 = vadd.f32 %v309, %v310
    %v312 = vadd.f32 %v132, %v140
    %v313 = vrot.slane %v312, 4
    %v314 = vadd.f32 %v312, %v313
    %v315 = vrot.slane %v314, 2
    %v316 = vadd.f32 %v314, %v315
    %v317 = vrot.slane %v316, 1
    %v318 = vadd.f32 %v316, %v317
    %v319 = vadd.f32 %v133, %v141
    %v320 = vrot.slane %v319, 4
    %v321 = vadd.f32 %v319, %v320
    %v322 = vrot.slane %v321, 2
    %v323 = vadd.f32 %v321, %v322
    %v324 = vrot.slane %v323, 1
    %v325 = vadd.f32 %v323, %v324
    %v326 = vadd.f32 %v134, %v142
    %v327 = vrot.slane %v326, 4
    %v328 = vadd.f32 %v326, %v327
    %v329 = vrot.slane %v328, 2
    %v330 = vadd.f32 %v328, %v329
    %v331 = vrot.slane %v330, 1
    %v332 = vadd.f32 %v330, %v331
    %v333 = vadd.f32 %v135, %v143
    %v334 = vrot.slane %v333, 4
    %v335 = vadd.f32 %v333, %v334
    %v336 = vrot.slane %v335, 2
    %v337 = vadd.f32 %v335, %v336
    %v338 = vrot.slane %v337, 1
    %v339 = vadd.f32 %v337, %v338
    %v340 = vadd.f32 %v136, %v144
    %v341 = vrot.slane %v340, 4
    %v342 = vadd.f32 %v340, %v341
    %v343 = vrot.slane %v342, 2
    %v344 = vadd.f32 %v342, %v343
    %v345 = vrot.slane %v344, 1
    %v346 = vadd.f32 %v344, %v345
    %v347 = vadd.f32 %v137, %v145
    %v348 = vrot.slane %v347, 4
    %v349 = vadd.f32 %v347, %v348
    %v350 = vrot.slane %v349, 2
    %v351 = vadd.f32 %v349, %v350
    %v352 = vrot.slane %v351, 1
    %v353 = vadd.f32 %v351, %v352
    %v354 = vadd.f32 %v146, %v154
    %v355 = vrot.slane %v354, 4
    %v356 = vadd.f32 %v354, %v355
    %v357 = vrot.slane %v356, 2
    %v358 = vadd.f32 %v356, %v357
    %v359 = vrot.slane %v358, 1
    %v360 = vadd.f32 %v358, %v359
    %v361 = vadd.f32 %v147, %v155
    %v362 = vrot.slane %v361, 4
    %v363 = vadd.f32 %v361, %v362
    %v364 = vrot.slane %v363, 2
    %v365 = vadd.f32 %v363, %v364
    %v366 = vrot.slane %v365, 1
    %v367 = vadd.f32 %v365, %v366
    %v368 = vadd.f32 %v148, %v156
    %v369 = vrot.slane %v368, 4
    %v370 = vadd.f32 %v368, %v369
    %v371 = vrot.slane %v370, 2
    %v372 = vadd.f32 %v370, %v371
    %v373 = vrot.slane %v372, 1
    %v374 = vadd.f32 %v372, %v373
    %v375 = vadd.f32 %v149, %v157
    %v376 = vrot.slane %v375, 4
    %v377 = vadd.f32 %v375, %v376
    %v378 = vrot.slane %v377, 2
    %v379 = vadd.f32 %v377, %v378
    %v380 = vrot.slane %v379, 1
    %v381 = vadd.f32 %v379, %v380
    %v382 = vadd.f32 %v150, %v158
    %v383 = vrot.slane %v382, 4
    %v384 = vadd.f32 %v382, %v383
    %v385 = vrot.slane %v384, 2
    %v386 = vadd.f32 %v384, %v385
    %v387 = vrot.slane %v386, 1
    %v388 = vadd.f32 %v386, %v387
    %v389 = vadd.f32 %v151, %v159
    %v390 = vrot.slane %v389, 4
    %v391 = vadd.f32 %v389, %v390
    %v392 = vrot.slane %v391, 2
    %v393 = vadd.f32 %v391, %v392
    %v394 = vrot.slane %v393, 1
    %v395 = vadd.f32 %v393, %v394
    %v396 = vadd.f32 %v152, %v160
    %v397 = vrot.slane %v396, 4
    %v398 = vadd.f32 %v396, %v397
    %v399 = vrot.slane %v398, 2
    %v400 = vadd.f32 %v398, %v399
    %v401 = vrot.slane %v400, 1
    %v402 = vadd.f32 %v400, %v401
    %v403 = vadd.f32 %v153, %v161
    %v404 = vrot.slane %v403, 4
    %v405 = vadd.f32 %v403, %v404
    %v406 = vrot.slane %v405, 2
    %v407 = vadd.f32 %v405, %v406
    %v408 = vrot.slane %v407, 1
    %v409 = vadd.f32 %v407, %v408
    %v410 = vadd.f32 %v162, %v170
    %v411 = vrot.slane %v410, 4
    %v412 = vadd.f32 %v410, %v411
    %v413 = vrot.slane %v412, 2
    %v414 = vadd.f32 %v412, %v413
    %v415 = vrot.slane %v414, 1
    %v416 = vadd.f32 %v414, %v415
    %v417 = vadd.f32 %v163, %v171
    %v418 = vrot.slane %v417, 4
    %v419 = vadd.f32 %v417, %v418
    %v420 = vrot.slane %v419, 2
    %v421 = vadd.f32 %v419, %v420
    %v422 = vrot.slane %v421, 1
    %v423 = vadd.f32 %v421, %v422
    %v424 = vadd.f32 %v164, %v172
    %v425 = vrot.slane %v424, 4
    %v426 = vadd.f32 %v424, %v425
    %v427 = vrot.slane %v426, 2
    %v428 = vadd.f32 %v426, %v427
    %v429 = vrot.slane %v428, 1
    %v430 = vadd.f32 %v428, %v429
    %v431 = vadd.f32 %v165, %v173
    %v432 = vrot.slane %v431, 4
    %v433 = vadd.f32 %v431, %v432
    %v434 = vrot.slane %v433, 2
    %v435 = vadd.f32 %v433, %v434
    %v436 = vrot.slane %v435, 1
    %v437 = vadd.f32 %v435, %v436
    %v438 = vadd.f32 %v166, %v174
    %v439 = vrot.slane %v438, 4
    %v440 = vadd.f32 %v438, %v439
    %v441 = vrot.slane %v440, 2
    %v442 = vadd.f32 %v440, %v441
    %v443 = vrot.slane %v442, 1
    %v444 = vadd.f32 %v442, %v443
    %v445 = vadd.f32 %v167, %v175
    %v446 = vrot.slane %v445, 4
    %v447 = vadd.f32 %v445, %v446
    %v448 = vrot.slane %v447, 2
    %v449 = vadd.f32 %v447, %v448
    %v450 = vrot.slane %v449, 1
    %v451 = vadd.f32 %v449, %v450
    %v452 = vadd.f32 %v168, %v176
    %v453 = vrot.slane %v452, 4
    %v454 = vadd.f32 %v452, %v453
    %v455 = vrot.slane %v454, 2
    %v456 = vadd.f32 %v454, %v455
    %v457 = vrot.slane %v456, 1
    %v458 = vadd.f32 %v456, %v457
    %v459 = vadd.f32 %v169, %v177
    %v460 = vrot.slane %v459, 4
    %v461 = vadd.f32 %v459, %v460
    %v462 = vrot.slane %v461, 2
    %v463 = vadd.f32 %v461, %v462
    %v464 = vrot.slane %v463, 1
    %v465 = vadd.f32 %v463, %v464
    %v466 = vadd.f32 %v178, %v186
    %v467 = vrot.slane %v466, 4
    %v468 = vadd.f32 %v466, %v467
    %v469 = vrot.slane %v468, 2
    %v470 = vadd.f32 %v468, %v469
    %v471 = vrot.slane %v470, 1
    %v472 = vadd.f32 %v470, %v471
    %v473 = vadd.f32 %v179, %v187
    %v474 = vrot.slane %v473, 4
    %v475 = vadd.f32 %v473, %v474
    %v476 = vrot.slane %v475, 2
    %v477 = vadd.f32 %v475, %v476
    %v478 = vrot.slane %v477, 1
    %v479 = vadd.f32 %v477, %v478
    %v480 = vadd.f32 %v180, %v188
    %v481 = vrot.slane %v480, 4
    %v482 = vadd.f32 %v480, %v481
    %v483 = vrot.slane %v482, 2
    %v484 = vadd.f32 %v482, %v483
    %v485 = vrot.slane %v484, 1
    %v486 = vadd.f32 %v484, %v485
    %v487 = vadd.f32 %v181, %v189
    %v488 = vrot.slane %v487, 4
    %v489 = vadd.f32 %v487, %v488
    %v490 = vrot.slane %v489, 2
    %v491 = vadd.f32 %v489, %v490
    %v492 = vrot.slane %v491, 1
    %v493 = vadd.f32 %v491, %v492
    %v494 = vadd.f32 %v182, %v190
    %v495 = vrot.slane %v494, 4
    %v496 = vadd.f32 %v494, %v495
    %v497 = vrot.slane %v496, 2
    %v498 = vadd.f32 %v496, %v497
    %v499 = vrot.slane %v498, 1
    %v500 = vadd.f32 %v498, %v499
    %v501 = vadd.f32 %v183, %v191
    %v502 = vrot.slane %v501, 4
    %v503 = vadd.f32 %v501, %v502
    %v504 = vrot.slane %v503, 2
    %v505 = vadd.f32 %v503, %v504
    %v506 = vrot.slane %v505, 1
    %v507 = vadd.f32 %v505, %v506
    %v508 = vadd.f32 %v184, %v192
    %v509 = vrot.slane %v508, 4
    %v510 = vadd.f32 %v508, %v509
    %v511 = vrot.slane %v510, 2
    %v512 = vadd.f32 %v510, %v511
    %v513 = vrot.slane %v512, 1
    %v514 = vadd.f32 %v512, %v513
    %v515 = vadd.f32 %v185, %v193
    %v516 = vrot.slane %v515, 4
    %v517 = vadd.f32 %v515, %v516
    %v518 = vrot.slane %v517, 2
    %v519 = vadd.f32 %v517, %v518
    %v520 = vrot.slane %v519, 1
    %v521 = vadd.f32 %v519, %v520
    %v522 = vadd.f32 %v194, %v202
    %v523 = vrot.slane %v522, 4
    %v524 = vadd.f32 %v522, %v523
    %v525 = vrot.slane %v524, 2
    %v526 = vadd.f32 %v524, %v525
    %v527 = vrot.slane %v526, 1
    %v528 = vadd.f32 %v526, %v527
    %v529 = vadd.f32 %v195, %v203
    %v530 = vrot.slane %v529, 4
    %v531 = vadd.f32 %v529, %v530
    %v532 = vrot.slane %v531, 2
    %v533 = vadd.f32 %v531, %v532
    %v534 = vrot.slane %v533, 1
    %v535 = vadd.f32 %v533, %v534
    %v536 = vadd.f32 %v196, %v204
    %v537 = vrot.slane %v536, 4
    %v538 = vadd.f32 %v536, %v537
    %v539 = vrot.slane %v538, 2
    %v540 = vadd.f32 %v538, %v539
    %v541 = vrot.slane %v540, 1
    %v542 = vadd.f32 %v540, %v541
    %v543 = vadd.f32 %v197, %v205
    %v544 = vrot.slane %v543, 4
    %v545 = vadd.f32 %v543, %v544
    %v546 = vrot.slane %v545, 2
    %v547 = vadd.f32 %v545, %v546
    %v548 = vrot.slane %v547, 1
    %v549 = vadd.f32 %v547, %v548
    %v550 = vadd.f32 %v198, %v206
    %v551 = vrot.slane %v550, 4
    %v552 = vadd.f32 %v550, %v551
    %v553 = vrot.slane %v552, 2
    %v554 = vadd.f32 %v552, %v553
    %v555 = vrot.slane %v554, 1
    %v556 = vadd.f32 %v554, %v555
    %v557 = vadd.f32 %v199, %v207
    %v558 = vrot.slane %v557, 4
    %v559 = vadd.f32 %v557, %v558
    %v560 = vrot.slane %v559, 2
    %v561 = vadd.f32 %v559, %v560
    %v562 = vrot.slane %v561, 1
    %v563 = vadd.f32 %v561, %v562
    %v564 = vadd.f32 %v200, %v208
    %v565 = vrot.slane %v564, 4
    %v566 = vadd.f32 %v564, %v565
    %v567 = vrot.slane %v566, 2
    %v568 = vadd.f32 %v566, %v567
    %v569 = vrot.slane %v568, 1
    %v570 = vadd.f32 %v568, %v569
    %v571 = vadd.f32 %v201, %v209
    %v572 = vrot.slane %v571, 4
    %v573 = vadd.f32 %v571, %v572
    %v574 = vrot.slane %v573, 2
    %v575 = vadd.f32 %v573, %v574
    %v576 = vrot.slane %v575, 1
    %v577 = vadd.f32 %v575, %v576
    %v578 = vadd.f32 %v210, %v218
    %v579 = vrot.slane %v578, 4
    %v580 = vadd.f32 %v578, %v579
    %v581 = vrot.slane %v580, 2
    %v582 = vadd.f32 %v580, %v581
    %v583 = vrot.slane %v582, 1
    %v584 = vadd.f32 %v582, %v583
    %v585 = vadd.f32 %v211, %v219
    %v586 = vrot.slane %v585, 4
    %v587 = vadd.f32 %v585, %v586
    %v588 = vrot.slane %v587, 2
    %v589 = vadd.f32 %v587, %v588
    %v590 = vrot.slane %v589, 1
    %v591 = vadd.f32 %v589, %v590
    %v592 = vadd.f32 %v212, %v220
    %v593 = vrot.slane %v592, 4
    %v594 = vadd.f32 %v592, %v593
    %v595 = vrot.slane %v594, 2
    %v596 = vadd.f32 %v594, %v595
    %v597 = vrot.slane %v596, 1
    %v598 = vadd.f32 %v596, %v597
    %v599 = vadd.f32 %v213, %v221
    %v600 = vrot.slane %v599, 4
    %v601 = vadd.f32 %v599, %v600
    %v602 = vrot.slane %v601, 2
    %v603 = vadd.f32 %v601, %v602
    %v604 = vrot.slane %v603, 1
    %v605 = vadd.f32 %v603, %v604
    %v606 = vadd.f32 %v214, %v222
    %v607 = vrot.slane %v606, 4
    %v608 = vadd.f32 %v606, %v607
    %v609 = vrot.slane %v608, 2
    %v610 = vadd.f32 %v608, %v609
    %v611 = vrot.slane %v610, 1
    %v612 = vadd.f32 %v610, %v611
    %v613 = vadd.f32 %v215, %v223
    %v614 = vrot.slane %v613, 4
    %v615 = vadd.f32 %v613, %v614
    %v616 = vrot.slane %v615, 2
    %v617 = vadd.f32 %v615, %v616
    %v618 = vrot.slane %v617, 1
    %v619 = vadd.f32 %v617, %v618
    %v620 = vadd.f32 %v216, %v224
    %v621 = vrot.slane %v620, 4
    %v622 = vadd.f32 %v620, %v621
    %v623 = vrot.slane %v622, 2
    %v624 = vadd.f32 %v622, %v623
    %v625 = vrot.slane %v624, 1
    %v626 = vadd.f32 %v624, %v625
    %v627 = vadd.f32 %v217, %v225
    %v628 = vrot.slane %v627, 4
    %v629 = vadd.f32 %v627, %v628
    %v630 = vrot.slane %v629, 2
    %v631 = vadd.f32 %v629, %v630
    %v632 = vrot.slane %v631, 1
    %v633 = vadd.f32 %v631, %v632
    %v634 = vadd.f32 %v226, %v234
    %v635 = vrot.slane %v634, 4
    %v636 = vadd.f32 %v634, %v635
    %v637 = vrot.slane %v636, 2
    %v638 = vadd.f32 %v636, %v637
    %v639 = vrot.slane %v638, 1
    %v640 = vadd.f32 %v638, %v639
    %v641 = vadd.f32 %v227, %v235
    %v642 = vrot.slane %v641, 4
    %v643 = vadd.f32 %v641, %v642
    %v644 = vrot.slane %v643, 2
    %v645 = vadd.f32 %v643, %v644
    %v646 = vrot.slane %v645, 1
    %v647 = vadd.f32 %v645, %v646
    %v648 = vadd.f32 %v228, %v236
    %v649 = vrot.slane %v648, 4
    %v650 = vadd.f32 %v648, %v649
    %v651 = vrot.slane %v650, 2
    %v652 = vadd.f32 %v650, %v651
    %v653 = vrot.slane %v652, 1
    %v654 = vadd.f32 %v652, %v653
    %v655 = vadd.f32 %v229, %v237
    %v656 = vrot.slane %v655, 4
    %v657 = vadd.f32 %v655, %v656
    %v658 = vrot.slane %v657, 2
    %v659 = vadd.f32 %v657, %v658
    %v660 = vrot.slane %v659, 1
    %v661 = vadd.f32 %v659, %v660
    %v662 = vadd.f32 %v230, %v238
    %v663 = vrot.slane %v662, 4
    %v664 = vadd.f32 %v662, %v663
    %v665 = vrot.slane %v664, 2
    %v666 = vadd.f32 %v664, %v665
    %v667 = vrot.slane %v666, 1
    %v668 = vadd.f32 %v666, %v667
    %v669 = vadd.f32 %v231, %v239
    %v670 = vrot.slane %v669, 4
    %v671 = vadd.f32 %v669, %v670
    %v672 = vrot.slane %v671, 2
    %v673 = vadd.f32 %v671, %v672
    %v674 = vrot.slane %v673, 1
    %v675 = vadd.f32 %v673, %v674
    %v676 = vadd.f32 %v232, %v240
    %v677 = vrot.slane %v676, 4
    %v678 = vadd.f32 %v676, %v677
    %v679 = vrot.slane %v678, 2
    %v680 = vadd.f32 %v678, %v679
    %v681 = vrot.slane %v680, 1
    %v682 = vadd.f32 %v680, %v681
    %v683 = vadd.f32 %v233, %v241
    %v684 = vrot.slane %v683, 4
    %v685 = vadd.f32 %v683, %v684
    %v686 = vrot.slane %v685, 2
    %v687 = vadd.f32 %v685, %v686
    %v688 = vrot.slane %v687, 1
    %v689 = vadd.f32 %v687, %v688
    %v690 = vpack.c.bf16 %v248, %v248
    %v691 = vpack.c.bf16 %v255, %v255
    %v692 = vpack.c.bf16 %v262, %v262
    %v693 = vpack.c.bf16 %v269, %v269
    %v694 = vpack.c.bf16 %v276, %v276
    %v695 = vpack.c.bf16 %v283, %v283
    %v696 = vpack.c.bf16 %v290, %v290
    %v697 = vpack.c.bf16 %v297, %v297
    %v698 = vpack.c.bf16 %v304, %v304
    %v699 = vpack.c.bf16 %v311, %v311
    %v700 = vpack.c.bf16 %v318, %v318
    %v701 = vpack.c.bf16 %v325, %v325
    %v702 = vpack.c.bf16 %v332, %v332
    %v703 = vpack.c.bf16 %v339, %v339
    %v704 = vpack.c.bf16 %v346, %v346
    %v705 = vpack.c.bf16 %v353, %v353
    %v706 = vpack.c.bf16 %v360, %v360
    %v707 = vpack.c.bf16 %v367, %v367
    %v708 = vpack.c.bf16 %v374, %v374
    %v709 = vpack.c.bf16 %v381, %v381
    %v710 = vpack.c.bf16 %v388, %v388
    %v711 = vpack.c.bf16 %v395, %v395
    %v712 = vpack.c.bf16 %v402, %v402
    %v713 = vpack.c.bf16 %v409, %v409
    %v714 = vpack.c.bf16 %v416, %v416
    %v715 = vpack.c.bf16 %v423, %v423
    %v716 = vpack.c.bf16 %v430, %v430
    %v717 = vpack.c.bf16 %v437, %v437
    %v718 = vpack.c.bf16 %v444, %v444
    %v719 = vpack.c.bf16 %v451, %v451
    %v720 = vpack.c.bf16 %v458, %v458
    %v721 = vpack.c.bf16 %v465, %v465
    %v722 = vpack.c.bf16 %v472, %v472
    %v723 = vpack.c.bf16 %v479, %v479
    %v724 = vpack.c.bf16 %v486, %v486
    %v725 = vpack.c.bf16 %v493, %v493
    %v726 = vpack.c.bf16 %v500, %v500
    %v727 = vpack.c.bf16 %v507, %v507
    %v728 = vpack.c.bf16 %v514, %v514
    %v729 = vpack.c.bf16 %v521, %v521
    %v730 = vpack.c.bf16 %v528, %v528
    %v731 = vpack.c.bf16 %v535, %v535
    %v732 = vpack.c.bf16 %v542, %v542
    %v733 = vpack.c.bf16 %v549, %v549
    %v734 = vpack.c.bf16 %v556, %v556
    %v735 = vpack.c.bf16 %v563, %v563
    %v736 = vpack.c.bf16 %v570, %v570
    %v737 = vpack.c.bf16 %v577, %v577
    %v738 = vpack.c.bf16 %v584, %v584
    %v739 = vpack.c.bf16 %v591, %v591
    %v740 = vpack.c.bf16 %v598, %v598
    %v741 = vpack.c.bf16 %v605, %v605
    %v742 = vpack.c.bf16 %v612, %v612
    %v743 = vpack.c.bf16 %v619, %v619
    %v744 = vpack.c.bf16 %v626, %v626
    %v745 = vpack.c.bf16 %v633, %v633
    %v746 = vpack.c.bf16 %v640, %v640
    %v747 = vpack.c.bf16 %v647, %v647
    %v748 = vpack.c.bf16 %v654, %v654
    %v749 = vpack.c.bf16 %v661, %v661
    %v750 = vpack.c.bf16 %v668, %v668
    %v751 = vpack.c.bf16 %v675, %v675
    %v752 = vpack.c.bf16 %v682, %v682
    %v753 = vpack.c.bf16 %v689, %v689
    %v754 = vld [vmem:[#allocation5] sm:$0xff]
    %v755 = vld [vmem:[#allocation5 + $0x8] sm:$0xff]
    %v756 = vld [vmem:[#allocation5 + $0x10] sm:$0xff]
    %v757 = vld [vmem:[#allocation5 + $0x18] sm:$0xff]
    %v758 = vld [vmem:[#allocation5 + $0x20] sm:$0xff]
    %v759 = vld [vmem:[#allocation5 + $0x28] sm:$0xff]
    %v760 = vld [vmem:[#allocation5 + $0x30] sm:$0xff]
    %v761 = vld [vmem:[#allocation5 + $0x38] sm:$0xff]
    %v762 = vld [vmem:[#allocation5 + $0x40] sm:$0xff]
    %v763 = vld [vmem:[#allocation5 + $0x48] sm:$0xff]
    %v764 = vld [vmem:[#allocation5 + $0x50] sm:$0xff]
    %v765 = vld [vmem:[#allocation5 + $0x58] sm:$0xff]
    %v766 = vld [vmem:[#allocation5 + $0x60] sm:$0xff]
    %v767 = vld [vmem:[#allocation5 + $0x68] sm:$0xff]
    %v768 = vld [vmem:[#allocation5 + $0x70] sm:$0xff]
    %v769 = vld [vmem:[#allocation5 + $0x78] sm:$0xff]
    %v770 = vld [vmem:[#allocation5 + $0x80] sm:$0xff]
    %v771 = vld [vmem:[#allocation5 + $0x88] sm:$0xff]
    %v772 = vld [vmem:[#allocation5 + $0x90] sm:$0xff]
    %v773 = vld [vmem:[#allocation5 + $0x98] sm:$0xff]
    %v774 = vld [vmem:[#allocation5 + $0xa0] sm:$0xff]
    %v775 = vld [vmem:[#allocation5 + $0xa8] sm:$0xff]
    %v776 = vld [vmem:[#allocation5 + $0xb0] sm:$0xff]
    %v777 = vld [vmem:[#allocation5 + $0xb8] sm:$0xff]
    %v778 = vld [vmem:[#allocation5 + $0xc0] sm:$0xff]
    %v779 = vld [vmem:[#allocation5 + $0xc8] sm:$0xff]
    %v780 = vld [vmem:[#allocation5 + $0xd0] sm:$0xff]
    %v781 = vld [vmem:[#allocation5 + $0xd8] sm:$0xff]
    %v782 = vld [vmem:[#allocation5 + $0xe0] sm:$0xff]
    %v783 = vld [vmem:[#allocation5 + $0xe8] sm:$0xff]
    %v784 = vld [vmem:[#allocation5 + $0xf0] sm:$0xff]
    %v785 = vld [vmem:[#allocation5 + $0xf8] sm:$0xff]
    %v786 = vld [vmem:[#allocation5 + $0x100] sm:$0xff]
    %v787 = vld [vmem:[#allocation5 + $0x108] sm:$0xff]
    %v788 = vld [vmem:[#allocation5 + $0x110] sm:$0xff]
    %v789 = vld [vmem:[#allocation5 + $0x118] sm:$0xff]
    %v790 = vld [vmem:[#allocation5 + $0x120] sm:$0xff]
    %v791 = vld [vmem:[#allocation5 + $0x128] sm:$0xff]
    %v792 = vld [vmem:[#allocation5 + $0x130] sm:$0xff]
    %v793 = vld [vmem:[#allocation5 + $0x138] sm:$0xff]
    %v794 = vld [vmem:[#allocation5 + $0x140] sm:$0xff]
    %v795 = vld [vmem:[#allocation5 + $0x148] sm:$0xff]
    %v796 = vld [vmem:[#allocation5 + $0x150] sm:$0xff]
    %v797 = vld [vmem:[#allocation5 + $0x158] sm:$0xff]
    %v798 = vld [vmem:[#allocation5 + $0x160] sm:$0xff]
    %v799 = vld [vmem:[#allocation5 + $0x168] sm:$0xff]
    %v800 = vld [vmem:[#allocation5 + $0x170] sm:$0xff]
    %v801 = vld [vmem:[#allocation5 + $0x178] sm:$0xff]
    %v802 = vld [vmem:[#allocation5 + $0x180] sm:$0xff]
    %v803 = vld [vmem:[#allocation5 + $0x188] sm:$0xff]
    %v804 = vld [vmem:[#allocation5 + $0x190] sm:$0xff]
    %v805 = vld [vmem:[#allocation5 + $0x198] sm:$0xff]
    %v806 = vld [vmem:[#allocation5 + $0x1a0] sm:$0xff]
    %v807 = vld [vmem:[#allocation5 + $0x1a8] sm:$0xff]
    %v808 = vld [vmem:[#allocation5 + $0x1b0] sm:$0xff]
    %v809 = vld [vmem:[#allocation5 + $0x1b8] sm:$0xff]
    %v810 = vld [vmem:[#allocation5 + $0x1c0] sm:$0xff]
    %v811 = vld [vmem:[#allocation5 + $0x1c8] sm:$0xff]
    %v812 = vld [vmem:[#allocation5 + $0x1d0] sm:$0xff]
    %v813 = vld [vmem:[#allocation5 + $0x1d8] sm:$0xff]
    %v814 = vld [vmem:[#allocation5 + $0x1e0] sm:$0xff]
    %v815 = vld [vmem:[#allocation5 + $0x1e8] sm:$0xff]
    %v816 = vld [vmem:[#allocation5 + $0x1f0] sm:$0xff]
    %v817 = vld [vmem:[#allocation5 + $0x1f8] sm:$0xff]
    %v818 = vld [vmem:[#allocation5 + $0x200] sm:$0xff]
    %v819 = vld [vmem:[#allocation5 + $0x208] sm:$0xff]
    %v820 = vld [vmem:[#allocation5 + $0x210] sm:$0xff]
    %v821 = vld [vmem:[#allocation5 + $0x218] sm:$0xff]
    %v822 = vld [vmem:[#allocation5 + $0x220] sm:$0xff]
    %v823 = vld [vmem:[#allocation5 + $0x228] sm:$0xff]
    %v824 = vld [vmem:[#allocation5 + $0x230] sm:$0xff]
    %v825 = vld [vmem:[#allocation5 + $0x238] sm:$0xff]
    %v826 = vld [vmem:[#allocation5 + $0x240] sm:$0xff]
    %v827 = vld [vmem:[#allocation5 + $0x248] sm:$0xff]
    %v828 = vld [vmem:[#allocation5 + $0x250] sm:$0xff]
    %v829 = vld [vmem:[#allocation5 + $0x258] sm:$0xff]
    %v830 = vld [vmem:[#allocation5 + $0x260] sm:$0xff]
    %v831 = vld [vmem:[#allocation5 + $0x268] sm:$0xff]
    %v832 = vld [vmem:[#allocation5 + $0x270] sm:$0xff]
    %v833 = vld [vmem:[#allocation5 + $0x278] sm:$0xff]
    %v834 = vld [vmem:[#allocation5 + $0x280] sm:$0xff]
    %v835 = vld [vmem:[#allocation5 + $0x288] sm:$0xff]
    %v836 = vld [vmem:[#allocation5 + $0x290] sm:$0xff]
    %v837 = vld [vmem:[#allocation5 + $0x298] sm:$0xff]
    %v838 = vld [vmem:[#allocation5 + $0x2a0] sm:$0xff]
    %v839 = vld [vmem:[#allocation5 + $0x2a8] sm:$0xff]
    %v840 = vld [vmem:[#allocation5 + $0x2b0] sm:$0xff]
    %v841 = vld [vmem:[#allocation5 + $0x2b8] sm:$0xff]
    %v842 = vld [vmem:[#allocation5 + $0x2c0] sm:$0xff]
    %v843 = vld [vmem:[#allocation5 + $0x2c8] sm:$0xff]
    %v844 = vld [vmem:[#allocation5 + $0x2d0] sm:$0xff]
    %v845 = vld [vmem:[#allocation5 + $0x2d8] sm:$0xff]
    %v846 = vld [vmem:[#allocation5 + $0x2e0] sm:$0xff]
    %v847 = vld [vmem:[#allocation5 + $0x2e8] sm:$0xff]
    %v848 = vld [vmem:[#allocation5 + $0x2f0] sm:$0xff]
    %v849 = vld [vmem:[#allocation5 + $0x2f8] sm:$0xff]
    %v850 = vld [vmem:[#allocation5 + $0x300] sm:$0xff]
    %v851 = vld [vmem:[#allocation5 + $0x308] sm:$0xff]
    %v852 = vld [vmem:[#allocation5 + $0x310] sm:$0xff]
    %v853 = vld [vmem:[#allocation5 + $0x318] sm:$0xff]
    %v854 = vld [vmem:[#allocation5 + $0x320] sm:$0xff]
    %v855 = vld [vmem:[#allocation5 + $0x328] sm:$0xff]
    %v856 = vld [vmem:[#allocation5 + $0x330] sm:$0xff]
    %v857 = vld [vmem:[#allocation5 + $0x338] sm:$0xff]
    %v858 = vld [vmem:[#allocation5 + $0x340] sm:$0xff]
    %v859 = vld [vmem:[#allocation5 + $0x348] sm:$0xff]
    %v860 = vld [vmem:[#allocation5 + $0x350] sm:$0xff]
    %v861 = vld [vmem:[#allocation5 + $0x358] sm:$0xff]
    %v862 = vld [vmem:[#allocation5 + $0x360] sm:$0xff]
    %v863 = vld [vmem:[#allocation5 + $0x368] sm:$0xff]
    %v864 = vld [vmem:[#allocation5 + $0x370] sm:$0xff]
    %v865 = vld [vmem:[#allocation5 + $0x378] sm:$0xff]
    %v866 = vld [vmem:[#allocation5 + $0x380] sm:$0xff]
    %v867 = vld [vmem:[#allocation5 + $0x388] sm:$0xff]
    %v868 = vld [vmem:[#allocation5 + $0x390] sm:$0xff]
    %v869 = vld [vmem:[#allocation5 + $0x398] sm:$0xff]
    %v870 = vld [vmem:[#allocation5 + $0x3a0] sm:$0xff]
    %v871 = vld [vmem:[#allocation5 + $0x3a8] sm:$0xff]
    %v872 = vld [vmem:[#allocation5 + $0x3b0] sm:$0xff]
    %v873 = vld [vmem:[#allocation5 + $0x3b8] sm:$0xff]
    %v874 = vld [vmem:[#allocation5 + $0x3c0] sm:$0xff]
    %v875 = vld [vmem:[#allocation5 + $0x3c8] sm:$0xff]
    %v876 = vld [vmem:[#allocation5 + $0x3d0] sm:$0xff]
    %v877 = vld [vmem:[#allocation5 + $0x3d8] sm:$0xff]
    %v878 = vld [vmem:[#allocation5 + $0x3e0] sm:$0xff]
    %v879 = vld [vmem:[#allocation5 + $0x3e8] sm:$0xff]
    %v880 = vld [vmem:[#allocation5 + $0x3f0] sm:$0xff]
    %v881 = vld [vmem:[#allocation5 + $0x3f8] sm:$0xff]
    %v882 = vld [vmem:[#allocation5 + $0x400] sm:$0xff]
    %v883 = vld [vmem:[#allocation5 + $0x408] sm:$0xff]
    %v884 = vld [vmem:[#allocation5 + $0x410] sm:$0xff]
    %v885 = vld [vmem:[#allocation5 + $0x418] sm:$0xff]
    %v886 = vld [vmem:[#allocation5 + $0x420] sm:$0xff]
    %v887 = vld [vmem:[#allocation5 + $0x428] sm:$0xff]
    %v888 = vld [vmem:[#allocation5 + $0x430] sm:$0xff]
    %v889 = vld [vmem:[#allocation5 + $0x438] sm:$0xff]
    %v890 = vld [vmem:[#allocation5 + $0x440] sm:$0xff]
    %v891 = vld [vmem:[#allocation5 + $0x448] sm:$0xff]
    %v892 = vld [vmem:[#allocation5 + $0x450] sm:$0xff]
    %v893 = vld [vmem:[#allocation5 + $0x458] sm:$0xff]
    %v894 = vld [vmem:[#allocation5 + $0x460] sm:$0xff]
    %v895 = vld [vmem:[#allocation5 + $0x468] sm:$0xff]
    %v896 = vld [vmem:[#allocation5 + $0x470] sm:$0xff]
    %v897 = vld [vmem:[#allocation5 + $0x478] sm:$0xff]
    %v898 = vld [vmem:[#allocation5 + $0x480] sm:$0xff]
    %v899 = vld [vmem:[#allocation5 + $0x488] sm:$0xff]
    %v900 = vld [vmem:[#allocation5 + $0x490] sm:$0xff]
    %v901 = vld [vmem:[#allocation5 + $0x498] sm:$0xff]
    %v902 = vld [vmem:[#allocation5 + $0x4a0] sm:$0xff]
    %v903 = vld [vmem:[#allocation5 + $0x4a8] sm:$0xff]
    %v904 = vld [vmem:[#allocation5 + $0x4b0] sm:$0xff]
    %v905 = vld [vmem:[#allocation5 + $0x4b8] sm:$0xff]
    %v906 = vld [vmem:[#allocation5 + $0x4c0] sm:$0xff]
    %v907 = vld [vmem:[#allocation5 + $0x4c8] sm:$0xff]
    %v908 = vld [vmem:[#allocation5 + $0x4d0] sm:$0xff]
    %v909 = vld [vmem:[#allocation5 + $0x4d8] sm:$0xff]
    %v910 = vld [vmem:[#allocation5 + $0x4e0] sm:$0xff]
    %v911 = vld [vmem:[#allocation5 + $0x4e8] sm:$0xff]
    %v912 = vld [vmem:[#allocation5 + $0x4f0] sm:$0xff]
    %v913 = vld [vmem:[#allocation5 + $0x4f8] sm:$0xff]
    %v914 = vld [vmem:[#allocation5 + $0x500] sm:$0xff]
    %v915 = vld [vmem:[#allocation5 + $0x508] sm:$0xff]
    %v916 = vld [vmem:[#allocation5 + $0x510] sm:$0xff]
    %v917 = vld [vmem:[#allocation5 + $0x518] sm:$0xff]
    %v918 = vld [vmem:[#allocation5 + $0x520] sm:$0xff]
    %v919 = vld [vmem:[#allocation5 + $0x528] sm:$0xff]
    %v920 = vld [vmem:[#allocation5 + $0x530] sm:$0xff]
    %v921 = vld [vmem:[#allocation5 + $0x538] sm:$0xff]
    %v922 = vld [vmem:[#allocation5 + $0x540] sm:$0xff]
    %v923 = vld [vmem:[#allocation5 + $0x548] sm:$0xff]
    %v924 = vld [vmem:[#allocation5 + $0x550] sm:$0xff]
    %v925 = vld [vmem:[#allocation5 + $0x558] sm:$0xff]
    %v926 = vld [vmem:[#allocation5 + $0x560] sm:$0xff]
    %v927 = vld [vmem:[#allocation5 + $0x568] sm:$0xff]
    %v928 = vld [vmem:[#allocation5 + $0x570] sm:$0xff]
    %v929 = vld [vmem:[#allocation5 + $0x578] sm:$0xff]
    %v930 = vld [vmem:[#allocation5 + $0x580] sm:$0xff]
    %v931 = vld [vmem:[#allocation5 + $0x588] sm:$0xff]
    %v932 = vld [vmem:[#allocation5 + $0x590] sm:$0xff]
    %v933 = vld [vmem:[#allocation5 + $0x598] sm:$0xff]
    %v934 = vld [vmem:[#allocation5 + $0x5a0] sm:$0xff]
    %v935 = vld [vmem:[#allocation5 + $0x5a8] sm:$0xff]
    %v936 = vld [vmem:[#allocation5 + $0x5b0] sm:$0xff]
    %v937 = vld [vmem:[#allocation5 + $0x5b8] sm:$0xff]
    %v938 = vld [vmem:[#allocation5 + $0x5c0] sm:$0xff]
    %v939 = vld [vmem:[#allocation5 + $0x5c8] sm:$0xff]
    %v940 = vld [vmem:[#allocation5 + $0x5d0] sm:$0xff]
    %v941 = vld [vmem:[#allocation5 + $0x5d8] sm:$0xff]
    %v942 = vld [vmem:[#allocation5 + $0x5e0] sm:$0xff]
    %v943 = vld [vmem:[#allocation5 + $0x5e8] sm:$0xff]
    %v944 = vld [vmem:[#allocation5 + $0x5f0] sm:$0xff]
    %v945 = vld [vmem:[#allocation5 + $0x5f8] sm:$0xff]
    %v946 = vld [vmem:[#allocation5 + $0x600] sm:$0xff]
    %v947 = vld [vmem:[#allocation5 + $0x608] sm:$0xff]
    %v948 = vld [vmem:[#allocation5 + $0x610] sm:$0xff]
    %v949 = vld [vmem:[#allocation5 + $0x618] sm:$0xff]
    %v950 = vld [vmem:[#allocation5 + $0x620] sm:$0xff]
    %v951 = vld [vmem:[#allocation5 + $0x628] sm:$0xff]
    %v952 = vld [vmem:[#allocation5 + $0x630] sm:$0xff]
    %v953 = vld [vmem:[#allocation5 + $0x638] sm:$0xff]
    %v954 = vld [vmem:[#allocation5 + $0x640] sm:$0xff]
    %v955 = vld [vmem:[#allocation5 + $0x648] sm:$0xff]
    %v956 = vld [vmem:[#allocation5 + $0x650] sm:$0xff]
    %v957 = vld [vmem:[#allocation5 + $0x658] sm:$0xff]
    %v958 = vld [vmem:[#allocation5 + $0x660] sm:$0xff]
    %v959 = vld [vmem:[#allocation5 + $0x668] sm:$0xff]
    %v960 = vld [vmem:[#allocation5 + $0x670] sm:$0xff]
    %v961 = vld [vmem:[#allocation5 + $0x678] sm:$0xff]
    %v962 = vld [vmem:[#allocation5 + $0x680] sm:$0xff]
    %v963 = vld [vmem:[#allocation5 + $0x688] sm:$0xff]
    %v964 = vld [vmem:[#allocation5 + $0x690] sm:$0xff]
    %v965 = vld [vmem:[#allocation5 + $0x698] sm:$0xff]
    %v966 = vld [vmem:[#allocation5 + $0x6a0] sm:$0xff]
    %v967 = vld [vmem:[#allocation5 + $0x6a8] sm:$0xff]
    %v968 = vld [vmem:[#allocation5 + $0x6b0] sm:$0xff]
    %v969 = vld [vmem:[#allocation5 + $0x6b8] sm:$0xff]
    %v970 = vld [vmem:[#allocation5 + $0x6c0] sm:$0xff]
    %v971 = vld [vmem:[#allocation5 + $0x6c8] sm:$0xff]
    %v972 = vld [vmem:[#allocation5 + $0x6d0] sm:$0xff]
    %v973 = vld [vmem:[#allocation5 + $0x6d8] sm:$0xff]
    %v974 = vld [vmem:[#allocation5 + $0x6e0] sm:$0xff]
    %v975 = vld [vmem:[#allocation5 + $0x6e8] sm:$0xff]
    %v976 = vld [vmem:[#allocation5 + $0x6f0] sm:$0xff]
    %v977 = vld [vmem:[#allocation5 + $0x6f8] sm:$0xff]
    %v978 = vld [vmem:[#allocation5 + $0x700] sm:$0xff]
    %v979 = vld [vmem:[#allocation5 + $0x708] sm:$0xff]
    %v980 = vld [vmem:[#allocation5 + $0x710] sm:$0xff]
    %v981 = vld [vmem:[#allocation5 + $0x718] sm:$0xff]
    %v982 = vld [vmem:[#allocation5 + $0x720] sm:$0xff]
    %v983 = vld [vmem:[#allocation5 + $0x728] sm:$0xff]
    %v984 = vld [vmem:[#allocation5 + $0x730] sm:$0xff]
    %v985 = vld [vmem:[#allocation5 + $0x738] sm:$0xff]
    %v986 = vld [vmem:[#allocation5 + $0x740] sm:$0xff]
    %v987 = vld [vmem:[#allocation5 + $0x748] sm:$0xff]
    %v988 = vld [vmem:[#allocation5 + $0x750] sm:$0xff]
    %v989 = vld [vmem:[#allocation5 + $0x758] sm:$0xff]
    %v990 = vld [vmem:[#allocation5 + $0x760] sm:$0xff]
    %v991 = vld [vmem:[#allocation5 + $0x768] sm:$0xff]
    %v992 = vld [vmem:[#allocation5 + $0x770] sm:$0xff]
    %v993 = vld [vmem:[#allocation5 + $0x778] sm:$0xff]
    %v994 = vld [vmem:[#allocation5 + $0x780] sm:$0xff]
    %v995 = vld [vmem:[#allocation5 + $0x788] sm:$0xff]
    %v996 = vld [vmem:[#allocation5 + $0x790] sm:$0xff]
    %v997 = vld [vmem:[#allocation5 + $0x798] sm:$0xff]
    %v998 = vld [vmem:[#allocation5 + $0x7a0] sm:$0xff]
    %v999 = vld [vmem:[#allocation5 + $0x7a8] sm:$0xff]
    %v1000 = vld [vmem:[#allocation5 + $0x7b0] sm:$0xff]
    %v1001 = vld [vmem:[#allocation5 + $0x7b8] sm:$0xff]
    %v1002 = vld [vmem:[#allocation5 + $0x7c0] sm:$0xff]
    %v1003 = vld [vmem:[#allocation5 + $0x7c8] sm:$0xff]
    %v1004 = vld [vmem:[#allocation5 + $0x7d0] sm:$0xff]
    %v1005 = vld [vmem:[#allocation5 + $0x7d8] sm:$0xff]
    %v1006 = vld [vmem:[#allocation5 + $0x7e0] sm:$0xff]
    %v1007 = vld [vmem:[#allocation5 + $0x7e8] sm:$0xff]
    %v1008 = vld [vmem:[#allocation5 + $0x7f0] sm:$0xff]
    %v1009 = vld [vmem:[#allocation5 + $0x7f8] sm:$0xff]
    %v1010 = vld [vmem:[%s2] sm:$0xf]
    %v1012 = vlaneseq
    %v1013 = vshrl.u32 %v1012, 7
    %v1014 = vsub.s32 0, %v1013
    %v1015 = vrot.slane %v1010, %v1014
    %v1016 = vlaneseq
    %v1017 = vshrl.u32 %v1016, 7
    %v1018 = vsub.s32 1, %v1017
    %v1019 = vrot.slane %v1010, %v1018
    %v1020 = vlaneseq
    %v1021 = vshrl.u32 %v1020, 7
    %v1022 = vsub.s32 2, %v1021
    %v1023 = vrot.slane %v1010, %v1022
    %v1024 = vlaneseq
    %v1025 = vshrl.u32 %v1024, 7
    %v1026 = vsub.s32 3, %v1025
    %v1027 = vrot.slane %v1010, %v1026
    %v1096 = vunpack.c.l.b16 %v690
    %v1097 = vunpack.c.l.b16 %v691
    %v1098 = vunpack.c.l.b16 %v692
    %v1099 = vunpack.c.l.b16 %v693
    %v1100 = vunpack.c.l.b16 %v694
    %v1101 = vunpack.c.l.b16 %v695
    %v1102 = vunpack.c.l.b16 %v696
    %v1103 = vunpack.c.l.b16 %v697
    %v1104 = vunpack.c.l.b16 %v698
    %v1105 = vunpack.c.l.b16 %v699
    %v1106 = vunpack.c.l.b16 %v700
    %v1107 = vunpack.c.l.b16 %v701
    %v1108 = vunpack.c.l.b16 %v702
    %v1109 = vunpack.c.l.b16 %v703
    %v1110 = vunpack.c.l.b16 %v704
    %v1111 = vunpack.c.l.b16 %v705
    %v1112 = vunpack.c.l.b16 %v706
    %v1113 = vunpack.c.l.b16 %v707
    %v1114 = vunpack.c.l.b16 %v708
    %v1115 = vunpack.c.l.b16 %v709
    %v1116 = vunpack.c.l.b16 %v710
    %v1117 = vunpack.c.l.b16 %v711
    %v1118 = vunpack.c.l.b16 %v712
    %v1119 = vunpack.c.l.b16 %v713
    %v1120 = vunpack.c.l.b16 %v714
    %v1121 = vunpack.c.l.b16 %v715
    %v1122 = vunpack.c.l.b16 %v716
    %v1123 = vunpack.c.l.b16 %v717
    %v1124 = vunpack.c.l.b16 %v718
    %v1125 = vunpack.c.l.b16 %v719
    %v1126 = vunpack.c.l.b16 %v720
    %v1127 = vunpack.c.l.b16 %v721
    %v1128 = vunpack.c.l.b16 %v722
    %v1129 = vunpack.c.l.b16 %v723
    %v1130 = vunpack.c.l.b16 %v724
    %v1131 = vunpack.c.l.b16 %v725
    %v1132 = vunpack.c.l.b16 %v726
    %v1133 = vunpack.c.l.b16 %v727
    %v1134 = vunpack.c.l.b16 %v728
    %v1135 = vunpack.c.l.b16 %v729
    %v1136 = vunpack.c.l.b16 %v730
    %v1137 = vunpack.c.l.b16 %v731
    %v1138 = vunpack.c.l.b16 %v732
    %v1139 = vunpack.c.l.b16 %v733
    %v1140 = vunpack.c.l.b16 %v734
    %v1141 = vunpack.c.l.b16 %v735
    %v1142 = vunpack.c.l.b16 %v736
    %v1143 = vunpack.c.l.b16 %v737
    %v1144 = vunpack.c.l.b16 %v738
    %v1145 = vunpack.c.l.b16 %v739
    %v1146 = vunpack.c.l.b16 %v740
    %v1147 = vunpack.c.l.b16 %v741
    %v1148 = vunpack.c.l.b16 %v742
    %v1149 = vunpack.c.l.b16 %v743
    %v1150 = vunpack.c.l.b16 %v744
    %v1151 = vunpack.c.l.b16 %v745
    %v1152 = vunpack.c.l.b16 %v746
    %v1153 = vunpack.c.l.b16 %v747
    %v1154 = vunpack.c.l.b16 %v748
    %v1155 = vunpack.c.l.b16 %v749
    %v1156 = vunpack.c.l.b16 %v750
    %v1157 = vunpack.c.l.b16 %v751
    %v1158 = vunpack.c.l.b16 %v752
    %v1159 = vunpack.c.l.b16 %v753
    %vm1160 = vcmask 1041409
    %v1161 = vsel %vm1160, %v1104, %v1096
    %vm1162 = vcmask 1042434
    %v1163 = vsel %vm1162, %v1112, %v1161
    %vm1164 = vcmask 1043459
    %v1165 = vsel %vm1164, %v1120, %v1163
    %vm1166 = vcmask 1044484
    %v1167 = vsel %vm1166, %v1128, %v1165
    %vm1168 = vcmask 1045509
    %v1169 = vsel %vm1168, %v1136, %v1167
    %vm1170 = vcmask 1046534
    %v1171 = vsel %vm1170, %v1144, %v1169
    %vm1172 = vcmask 1047559
    %v1173 = vsel %vm1172, %v1152, %v1171
    %v1174 = vsel %vm1160, %v1105, %v1097
    %v1175 = vsel %vm1162, %v1113, %v1174
    %v1176 = vsel %vm1164, %v1121, %v1175
    %v1177 = vsel %vm1166, %v1129, %v1176
    %v1178 = vsel %vm1168, %v1137, %v1177
    %v1179 = vsel %vm1170, %v1145, %v1178
    %v1180 = vsel %vm1172, %v1153, %v1179
    %v1181 = vsel %vm1160, %v1106, %v1098
    %v1182 = vsel %vm1162, %v1114, %v1181
    %v1183 = vsel %vm1164, %v1122, %v1182
    %v1184 = vsel %vm1166, %v1130, %v1183
    %v1185 = vsel %vm1168, %v1138, %v1184
    %v1186 = vsel %vm1170, %v1146, %v1185
    %v1187 = vsel %vm1172, %v1154, %v1186
    %v1188 = vsel %vm1160, %v1107, %v1099
    %v1189 = vsel %vm1162, %v1115, %v1188
    %v1190 = vsel %vm1164, %v1123, %v1189
    %v1191 = vsel %vm1166, %v1131, %v1190
    %v1192 = vsel %vm1168, %v1139, %v1191
    %v1193 = vsel %vm1170, %v1147, %v1192
    %v1194 = vsel %vm1172, %v1155, %v1193
    %v1195 = vsel %vm1160, %v1108, %v1100
    %v1196 = vsel %vm1162, %v1116, %v1195
    %v1197 = vsel %vm1164, %v1124, %v1196
    %v1198 = vsel %vm1166, %v1132, %v1197
    %v1199 = vsel %vm1168, %v1140, %v1198
    %v1200 = vsel %vm1170, %v1148, %v1199
    %v1201 = vsel %vm1172, %v1156, %v1200
    %v1202 = vsel %vm1160, %v1109, %v1101
    %v1203 = vsel %vm1162, %v1117, %v1202
    %v1204 = vsel %vm1164, %v1125, %v1203
    %v1205 = vsel %vm1166, %v1133, %v1204
    %v1206 = vsel %vm1168, %v1141, %v1205
    %v1207 = vsel %vm1170, %v1149, %v1206
    %v1208 = vsel %vm1172, %v1157, %v1207
    %v1209 = vsel %vm1160, %v1110, %v1102
    %v1210 = vsel %vm1162, %v1118, %v1209
    %v1211 = vsel %vm1164, %v1126, %v1210
    %v1212 = vsel %vm1166, %v1134, %v1211
    %v1213 = vsel %vm1168, %v1142, %v1212
    %v1214 = vsel %vm1170, %v1150, %v1213
    %v1215 = vsel %vm1172, %v1158, %v1214
    %v1216 = vsel %vm1160, %v1111, %v1103
    %v1217 = vsel %vm1162, %v1119, %v1216
    %v1218 = vsel %vm1164, %v1127, %v1217
    %v1219 = vsel %vm1166, %v1135, %v1218
    %v1220 = vsel %vm1168, %v1143, %v1219
    %v1221 = vsel %vm1170, %v1151, %v1220
    %v1222 = vsel %vm1172, %v1159, %v1221
    %v1223 = vpack.c.b16 %v1173, %v1173
    %v1224 = vpack.c.b16 %v1180, %v1180
    %v1225 = vpack.c.b16 %v1187, %v1187
    %v1226 = vpack.c.b16 %v1194, %v1194
    %v1227 = vpack.c.b16 %v1201, %v1201
    %v1228 = vpack.c.b16 %v1208, %v1208
    %v1229 = vpack.c.b16 %v1215, %v1215
    %v1230 = vpack.c.b16 %v1222, %v1222
    %v1495 = vunpack.c.l.b16 %v754
    %v1496 = vunpack.c.h.b16 %v754
    %v1497 = vunpack.c.l.b16 %v755
    %v1498 = vunpack.c.h.b16 %v755
    %v1499 = vunpack.c.l.b16 %v756
    %v1500 = vunpack.c.h.b16 %v756
    %v1501 = vunpack.c.l.b16 %v757
    %v1502 = vunpack.c.h.b16 %v757
    %v1503 = vunpack.c.l.b16 %v758
    %v1504 = vunpack.c.h.b16 %v758
    %v1505 = vunpack.c.l.b16 %v759
    %v1506 = vunpack.c.h.b16 %v759
    %v1507 = vunpack.c.l.b16 %v760
    %v1508 = vunpack.c.h.b16 %v760
    %v1509 = vunpack.c.l.b16 %v761
    %v1510 = vunpack.c.h.b16 %v761
    %v1511 = vunpack.c.l.b16 %v762
    %v1512 = vunpack.c.h.b16 %v762
    %v1513 = vunpack.c.l.b16 %v763
    %v1514 = vunpack.c.h.b16 %v763
    %v1515 = vunpack.c.l.b16 %v764
    %v1516 = vunpack.c.h.b16 %v764
    %v1517 = vunpack.c.l.b16 %v765
    %v1518 = vunpack.c.h.b16 %v765
    %v1519 = vunpack.c.l.b16 %v766
    %v1520 = vunpack.c.h.b16 %v766
    %v1521 = vunpack.c.l.b16 %v767
    %v1522 = vunpack.c.h.b16 %v767
    %v1523 = vunpack.c.l.b16 %v768
    %v1524 = vunpack.c.h.b16 %v768
    %v1525 = vunpack.c.l.b16 %v769
    %v1526 = vunpack.c.h.b16 %v769
    %v1527 = vunpack.c.l.b16 %v770
    %v1528 = vunpack.c.h.b16 %v770
    %v1529 = vunpack.c.l.b16 %v771
    %v1530 = vunpack.c.h.b16 %v771
    %v1531 = vunpack.c.l.b16 %v772
    %v1532 = vunpack.c.h.b16 %v772
    %v1533 = vunpack.c.l.b16 %v773
    %v1534 = vunpack.c.h.b16 %v773
    %v1535 = vunpack.c.l.b16 %v774
    %v1536 = vunpack.c.h.b16 %v774
    %v1537 = vunpack.c.l.b16 %v775
    %v1538 = vunpack.c.h.b16 %v775
    %v1539 = vunpack.c.l.b16 %v776
    %v1540 = vunpack.c.h.b16 %v776
    %v1541 = vunpack.c.l.b16 %v777
    %v1542 = vunpack.c.h.b16 %v777
    %v1543 = vunpack.c.l.b16 %v778
    %v1544 = vunpack.c.h.b16 %v778
    %v1545 = vunpack.c.l.b16 %v779
    %v1546 = vunpack.c.h.b16 %v779
    %v1547 = vunpack.c.l.b16 %v780
    %v1548 = vunpack.c.h.b16 %v780
    %v1549 = vunpack.c.l.b16 %v781
    %v1550 = vunpack.c.h.b16 %v781
    %v1551 = vunpack.c.l.b16 %v782
    %v1552 = vunpack.c.h.b16 %v782
    %v1553 = vunpack.c.l.b16 %v783
    %v1554 = vunpack.c.h.b16 %v783
    %v1555 = vunpack.c.l.b16 %v784
    %v1556 = vunpack.c.h.b16 %v784
    %v1557 = vunpack.c.l.b16 %v785
    %v1558 = vunpack.c.h.b16 %v785
    %v1559 = vunpack.c.l.b16 %v786
    %v1560 = vunpack.c.h.b16 %v786
    %v1561 = vunpack.c.l.b16 %v787
    %v1562 = vunpack.c.h.b16 %v787
    %v1563 = vunpack.c.l.b16 %v788
    %v1564 = vunpack.c.h.b16 %v788
    %v1565 = vunpack.c.l.b16 %v789
    %v1566 = vunpack.c.h.b16 %v789
    %v1567 = vunpack.c.l.b16 %v790
    %v1568 = vunpack.c.h.b16 %v790
    %v1569 = vunpack.c.l.b16 %v791
    %v1570 = vunpack.c.h.b16 %v791
    %v1571 = vunpack.c.l.b16 %v792
    %v1572 = vunpack.c.h.b16 %v792
    %v1573 = vunpack.c.l.b16 %v793
    %v1574 = vunpack.c.h.b16 %v793
    %v1575 = vunpack.c.l.b16 %v794
    %v1576 = vunpack.c.h.b16 %v794
    %v1577 = vunpack.c.l.b16 %v795
    %v1578 = vunpack.c.h.b16 %v795
    %v1579 = vunpack.c.l.b16 %v796
    %v1580 = vunpack.c.h.b16 %v796
    %v1581 = vunpack.c.l.b16 %v797
    %v1582 = vunpack.c.h.b16 %v797
    %v1583 = vunpack.c.l.b16 %v798
    %v1584 = vunpack.c.h.b16 %v798
    %v1585 = vunpack.c.l.b16 %v799
    %v1586 = vunpack.c.h.b16 %v799
    %v1587 = vunpack.c.l.b16 %v800
    %v1588 = vunpack.c.h.b16 %v800
    %v1589 = vunpack.c.l.b16 %v801
    %v1590 = vunpack.c.h.b16 %v801
    %v1591 = vunpack.c.l.b16 %v802
    %v1592 = vunpack.c.h.b16 %v802
    %v1593 = vunpack.c.l.b16 %v803
    %v1594 = vunpack.c.h.b16 %v803
    %v1595 = vunpack.c.l.b16 %v804
    %v1596 = vunpack.c.h.b16 %v804
    %v1597 = vunpack.c.l.b16 %v805
    %v1598 = vunpack.c.h.b16 %v805
    %v1599 = vunpack.c.l.b16 %v806
    %v1600 = vunpack.c.h.b16 %v806
    %v1601 = vunpack.c.l.b16 %v807
    %v1602 = vunpack.c.h.b16 %v807
    %v1603 = vunpack.c.l.b16 %v808
    %v1604 = vunpack.c.h.b16 %v808
    %v1605 = vunpack.c.l.b16 %v809
    %v1606 = vunpack.c.h.b16 %v809
    %v1607 = vunpack.c.l.b16 %v810
    %v1608 = vunpack.c.h.b16 %v810
    %v1609 = vunpack.c.l.b16 %v811
    %v1610 = vunpack.c.h.b16 %v811
    %v1611 = vunpack.c.l.b16 %v812
    %v1612 = vunpack.c.h.b16 %v812
    %v1613 = vunpack.c.l.b16 %v813
    %v1614 = vunpack.c.h.b16 %v813
    %v1615 = vunpack.c.l.b16 %v814
    %v1616 = vunpack.c.h.b16 %v814
    %v1617 = vunpack.c.l.b16 %v815
    %v1618 = vunpack.c.h.b16 %v815
    %v1619 = vunpack.c.l.b16 %v816
    %v1620 = vunpack.c.h.b16 %v816
    %v1621 = vunpack.c.l.b16 %v817
    %v1622 = vunpack.c.h.b16 %v817
    %v1623 = vunpack.c.l.b16 %v818
    %v1624 = vunpack.c.h.b16 %v818
    %v1625 = vunpack.c.l.b16 %v819
    %v1626 = vunpack.c.h.b16 %v819
    %v1627 = vunpack.c.l.b16 %v820
    %v1628 = vunpack.c.h.b16 %v820
    %v1629 = vunpack.c.l.b16 %v821
    %v1630 = vunpack.c.h.b16 %v821
    %v1631 = vunpack.c.l.b16 %v822
    %v1632 = vunpack.c.h.b16 %v822
    %v1633 = vunpack.c.l.b16 %v823
    %v1634 = vunpack.c.h.b16 %v823
    %v1635 = vunpack.c.l.b16 %v824
    %v1636 = vunpack.c.h.b16 %v824
    %v1637 = vunpack.c.l.b16 %v825
    %v1638 = vunpack.c.h.b16 %v825
    %v1639 = vunpack.c.l.b16 %v826
    %v1640 = vunpack.c.h.b16 %v826
    %v1641 = vunpack.c.l.b16 %v827
    %v1642 = vunpack.c.h.b16 %v827
    %v1643 = vunpack.c.l.b16 %v828
    %v1644 = vunpack.c.h.b16 %v828
    %v1645 = vunpack.c.l.b16 %v829
    %v1646 = vunpack.c.h.b16 %v829
    %v1647 = vunpack.c.l.b16 %v830
    %v1648 = vunpack.c.h.b16 %v830
    %v1649 = vunpack.c.l.b16 %v831
    %v1650 = vunpack.c.h.b16 %v831
    %v1651 = vunpack.c.l.b16 %v832
    %v1652 = vunpack.c.h.b16 %v832
    %v1653 = vunpack.c.l.b16 %v833
    %v1654 = vunpack.c.h.b16 %v833
    %v1655 = vunpack.c.l.b16 %v834
    %v1656 = vunpack.c.h.b16 %v834
    %v1657 = vunpack.c.l.b16 %v835
    %v1658 = vunpack.c.h.b16 %v835
    %v1659 = vunpack.c.l.b16 %v836
    %v1660 = vunpack.c.h.b16 %v836
    %v1661 = vunpack.c.l.b16 %v837
    %v1662 = vunpack.c.h.b16 %v837
    %v1663 = vunpack.c.l.b16 %v838
    %v1664 = vunpack.c.h.b16 %v838
    %v1665 = vunpack.c.l.b16 %v839
    %v1666 = vunpack.c.h.b16 %v839
    %v1667 = vunpack.c.l.b16 %v840
    %v1668 = vunpack.c.h.b16 %v840
    %v1669 = vunpack.c.l.b16 %v841
    %v1670 = vunpack.c.h.b16 %v841
    %v1671 = vunpack.c.l.b16 %v842
    %v1672 = vunpack.c.h.b16 %v842
    %v1673 = vunpack.c.l.b16 %v843
    %v1674 = vunpack.c.h.b16 %v843
    %v1675 = vunpack.c.l.b16 %v844
    %v1676 = vunpack.c.h.b16 %v844
    %v1677 = vunpack.c.l.b16 %v845
    %v1678 = vunpack.c.h.b16 %v845
    %v1679 = vunpack.c.l.b16 %v846
    %v1680 = vunpack.c.h.b16 %v846
    %v1681 = vunpack.c.l.b16 %v847
    %v1682 = vunpack.c.h.b16 %v847
    %v1683 = vunpack.c.l.b16 %v848
    %v1684 = vunpack.c.h.b16 %v848
    %v1685 = vunpack.c.l.b16 %v849
    %v1686 = vunpack.c.h.b16 %v849
    %v1687 = vunpack.c.l.b16 %v850
    %v1688 = vunpack.c.h.b16 %v850
    %v1689 = vunpack.c.l.b16 %v851
    %v1690 = vunpack.c.h.b16 %v851
    %v1691 = vunpack.c.l.b16 %v852
    %v1692 = vunpack.c.h.b16 %v852
    %v1693 = vunpack.c.l.b16 %v853
    %v1694 = vunpack.c.h.b16 %v853
    %v1695 = vunpack.c.l.b16 %v854
    %v1696 = vunpack.c.h.b16 %v854
    %v1697 = vunpack.c.l.b16 %v855
    %v1698 = vunpack.c.h.b16 %v855
    %v1699 = vunpack.c.l.b16 %v856
    %v1700 = vunpack.c.h.b16 %v856
    %v1701 = vunpack.c.l.b16 %v857
    %v1702 = vunpack.c.h.b16 %v857
    %v1703 = vunpack.c.l.b16 %v858
    %v1704 = vunpack.c.h.b16 %v858
    %v1705 = vunpack.c.l.b16 %v859
    %v1706 = vunpack.c.h.b16 %v859
    %v1707 = vunpack.c.l.b16 %v860
    %v1708 = vunpack.c.h.b16 %v860
    %v1709 = vunpack.c.l.b16 %v861
    %v1710 = vunpack.c.h.b16 %v861
    %v1711 = vunpack.c.l.b16 %v862
    %v1712 = vunpack.c.h.b16 %v862
    %v1713 = vunpack.c.l.b16 %v863
    %v1714 = vunpack.c.h.b16 %v863
    %v1715 = vunpack.c.l.b16 %v864
    %v1716 = vunpack.c.h.b16 %v864
    %v1717 = vunpack.c.l.b16 %v865
    %v1718 = vunpack.c.h.b16 %v865
    %v1719 = vunpack.c.l.b16 %v866
    %v1720 = vunpack.c.h.b16 %v866
    %v1721 = vunpack.c.l.b16 %v867
    %v1722 = vunpack.c.h.b16 %v867
    %v1723 = vunpack.c.l.b16 %v868
    %v1724 = vunpack.c.h.b16 %v868
    %v1725 = vunpack.c.l.b16 %v869
    %v1726 = vunpack.c.h.b16 %v869
    %v1727 = vunpack.c.l.b16 %v870
    %v1728 = vunpack.c.h.b16 %v870
    %v1729 = vunpack.c.l.b16 %v871
    %v1730 = vunpack.c.h.b16 %v871
    %v1731 = vunpack.c.l.b16 %v872
    %v1732 = vunpack.c.h.b16 %v872
    %v1733 = vunpack.c.l.b16 %v873
    %v1734 = vunpack.c.h.b16 %v873
    %v1735 = vunpack.c.l.b16 %v874
    %v1736 = vunpack.c.h.b16 %v874
    %v1737 = vunpack.c.l.b16 %v875
    %v1738 = vunpack.c.h.b16 %v875
    %v1739 = vunpack.c.l.b16 %v876
    %v1740 = vunpack.c.h.b16 %v876
    %v1741 = vunpack.c.l.b16 %v877
    %v1742 = vunpack.c.h.b16 %v877
    %v1743 = vunpack.c.l.b16 %v878
    %v1744 = vunpack.c.h.b16 %v878
    %v1745 = vunpack.c.l.b16 %v879
    %v1746 = vunpack.c.h.b16 %v879
    %v1747 = vunpack.c.l.b16 %v880
    %v1748 = vunpack.c.h.b16 %v880
    %v1749 = vunpack.c.l.b16 %v881
    %v1750 = vunpack.c.h.b16 %v881
    %v1751 = vunpack.c.l.b16 %v882
    %v1752 = vunpack.c.h.b16 %v882
    %v1753 = vunpack.c.l.b16 %v883
    %v1754 = vunpack.c.h.b16 %v883
    %v1755 = vunpack.c.l.b16 %v884
    %v1756 = vunpack.c.h.b16 %v884
    %v1757 = vunpack.c.l.b16 %v885
    %v1758 = vunpack.c.h.b16 %v885
    %v1759 = vunpack.c.l.b16 %v886
    %v1760 = vunpack.c.h.b16 %v886
    %v1761 = vunpack.c.l.b16 %v887
    %v1762 = vunpack.c.h.b16 %v887
    %v1763 = vunpack.c.l.b16 %v888
    %v1764 = vunpack.c.h.b16 %v888
    %v1765 = vunpack.c.l.b16 %v889
    %v1766 = vunpack.c.h.b16 %v889
    %v1767 = vunpack.c.l.b16 %v890
    %v1768 = vunpack.c.h.b16 %v890
    %v1769 = vunpack.c.l.b16 %v891
    %v1770 = vunpack.c.h.b16 %v891
    %v1771 = vunpack.c.l.b16 %v892
    %v1772 = vunpack.c.h.b16 %v892
    %v1773 = vunpack.c.l.b16 %v893
    %v1774 = vunpack.c.h.b16 %v893
    %v1775 = vunpack.c.l.b16 %v894
    %v1776 = vunpack.c.h.b16 %v894
    %v1777 = vunpack.c.l.b16 %v895
    %v1778 = vunpack.c.h.b16 %v895
    %v1779 = vunpack.c.l.b16 %v896
    %v1780 = vunpack.c.h.b16 %v896
    %v1781 = vunpack.c.l.b16 %v897
    %v1782 = vunpack.c.h.b16 %v897
    %v1783 = vunpack.c.l.b16 %v898
    %v1784 = vunpack.c.h.b16 %v898
    %v1785 = vunpack.c.l.b16 %v899
    %v1786 = vunpack.c.h.b16 %v899
    %v1787 = vunpack.c.l.b16 %v900
    %v1788 = vunpack.c.h.b16 %v900
    %v1789 = vunpack.c.l.b16 %v901
    %v1790 = vunpack.c.h.b16 %v901
    %v1791 = vunpack.c.l.b16 %v902
    %v1792 = vunpack.c.h.b16 %v902
    %v1793 = vunpack.c.l.b16 %v903
    %v1794 = vunpack.c.h.b16 %v903
    %v1795 = vunpack.c.l.b16 %v904
    %v1796 = vunpack.c.h.b16 %v904
    %v1797 = vunpack.c.l.b16 %v905
    %v1798 = vunpack.c.h.b16 %v905
    %v1799 = vunpack.c.l.b16 %v906
    %v1800 = vunpack.c.h.b16 %v906
    %v1801 = vunpack.c.l.b16 %v907
    %v1802 = vunpack.c.h.b16 %v907
    %v1803 = vunpack.c.l.b16 %v908
    %v1804 = vunpack.c.h.b16 %v908
    %v1805 = vunpack.c.l.b16 %v909
    %v1806 = vunpack.c.h.b16 %v909
    %v1807 = vunpack.c.l.b16 %v910
    %v1808 = vunpack.c.h.b16 %v910
    %v1809 = vunpack.c.l.b16 %v911
    %v1810 = vunpack.c.h.b16 %v911
    %v1811 = vunpack.c.l.b16 %v912
    %v1812 = vunpack.c.h.b16 %v912
    %v1813 = vunpack.c.l.b16 %v913
    %v1814 = vunpack.c.h.b16 %v913
    %v1815 = vunpack.c.l.b16 %v914
    %v1816 = vunpack.c.h.b16 %v914
    %v1817 = vunpack.c.l.b16 %v915
    %v1818 = vunpack.c.h.b16 %v915
    %v1819 = vunpack.c.l.b16 %v916
    %v1820 = vunpack.c.h.b16 %v916
    %v1821 = vunpack.c.l.b16 %v917
    %v1822 = vunpack.c.h.b16 %v917
    %v1823 = vunpack.c.l.b16 %v918
    %v1824 = vunpack.c.h.b16 %v918
    %v1825 = vunpack.c.l.b16 %v919
    %v1826 = vunpack.c.h.b16 %v919
    %v1827 = vunpack.c.l.b16 %v920
    %v1828 = vunpack.c.h.b16 %v920
    %v1829 = vunpack.c.l.b16 %v921
    %v1830 = vunpack.c.h.b16 %v921
    %v1831 = vunpack.c.l.b16 %v922
    %v1832 = vunpack.c.h.b16 %v922
    %v1833 = vunpack.c.l.b16 %v923
    %v1834 = vunpack.c.h.b16 %v923
    %v1835 = vunpack.c.l.b16 %v924
    %v1836 = vunpack.c.h.b16 %v924
    %v1837 = vunpack.c.l.b16 %v925
    %v1838 = vunpack.c.h.b16 %v925
    %v1839 = vunpack.c.l.b16 %v926
    %v1840 = vunpack.c.h.b16 %v926
    %v1841 = vunpack.c.l.b16 %v927
    %v1842 = vunpack.c.h.b16 %v927
    %v1843 = vunpack.c.l.b16 %v928
    %v1844 = vunpack.c.h.b16 %v928
    %v1845 = vunpack.c.l.b16 %v929
    %v1846 = vunpack.c.h.b16 %v929
    %v1847 = vunpack.c.l.b16 %v930
    %v1848 = vunpack.c.h.b16 %v930
    %v1849 = vunpack.c.l.b16 %v931
    %v1850 = vunpack.c.h.b16 %v931
    %v1851 = vunpack.c.l.b16 %v932
    %v1852 = vunpack.c.h.b16 %v932
    %v1853 = vunpack.c.l.b16 %v933
    %v1854 = vunpack.c.h.b16 %v933
    %v1855 = vunpack.c.l.b16 %v934
    %v1856 = vunpack.c.h.b16 %v934
    %v1857 = vunpack.c.l.b16 %v935
    %v1858 = vunpack.c.h.b16 %v935
    %v1859 = vunpack.c.l.b16 %v936
    %v1860 = vunpack.c.h.b16 %v936
    %v1861 = vunpack.c.l.b16 %v937
    %v1862 = vunpack.c.h.b16 %v937
    %v1863 = vunpack.c.l.b16 %v938
    %v1864 = vunpack.c.h.b16 %v938
    %v1865 = vunpack.c.l.b16 %v939
    %v1866 = vunpack.c.h.b16 %v939
    %v1867 = vunpack.c.l.b16 %v940
    %v1868 = vunpack.c.h.b16 %v940
    %v1869 = vunpack.c.l.b16 %v941
    %v1870 = vunpack.c.h.b16 %v941
    %v1871 = vunpack.c.l.b16 %v942
    %v1872 = vunpack.c.h.b16 %v942
    %v1873 = vunpack.c.l.b16 %v943
    %v1874 = vunpack.c.h.b16 %v943
    %v1875 = vunpack.c.l.b16 %v944
    %v1876 = vunpack.c.h.b16 %v944
    %v1877 = vunpack.c.l.b16 %v945
    %v1878 = vunpack.c.h.b16 %v945
    %v1879 = vunpack.c.l.b16 %v946
    %v1880 = vunpack.c.h.b16 %v946
    %v1881 = vunpack.c.l.b16 %v947
    %v1882 = vunpack.c.h.b16 %v947
    %v1883 = vunpack.c.l.b16 %v948
    %v1884 = vunpack.c.h.b16 %v948
    %v1885 = vunpack.c.l.b16 %v949
    %v1886 = vunpack.c.h.b16 %v949
    %v1887 = vunpack.c.l.b16 %v950
    %v1888 = vunpack.c.h.b16 %v950
    %v1889 = vunpack.c.l.b16 %v951
    %v1890 = vunpack.c.h.b16 %v951
    %v1891 = vunpack.c.l.b16 %v952
    %v1892 = vunpack.c.h.b16 %v952
    %v1893 = vunpack.c.l.b16 %v953
    %v1894 = vunpack.c.h.b16 %v953
    %v1895 = vunpack.c.l.b16 %v954
    %v1896 = vunpack.c.h.b16 %v954
    %v1897 = vunpack.c.l.b16 %v955
    %v1898 = vunpack.c.h.b16 %v955
    %v1899 = vunpack.c.l.b16 %v956
    %v1900 = vunpack.c.h.b16 %v956
    %v1901 = vunpack.c.l.b16 %v957
    %v1902 = vunpack.c.h.b16 %v957
    %v1903 = vunpack.c.l.b16 %v958
    %v1904 = vunpack.c.h.b16 %v958
    %v1905 = vunpack.c.l.b16 %v959
    %v1906 = vunpack.c.h.b16 %v959
    %v1907 = vunpack.c.l.b16 %v960
    %v1908 = vunpack.c.h.b16 %v960
    %v1909 = vunpack.c.l.b16 %v961
    %v1910 = vunpack.c.h.b16 %v961
    %v1911 = vunpack.c.l.b16 %v962
    %v1912 = vunpack.c.h.b16 %v962
    %v1913 = vunpack.c.l.b16 %v963
    %v1914 = vunpack.c.h.b16 %v963
    %v1915 = vunpack.c.l.b16 %v964
    %v1916 = vunpack.c.h.b16 %v964
    %v1917 = vunpack.c.l.b16 %v965
    %v1918 = vunpack.c.h.b16 %v965
    %v1919 = vunpack.c.l.b16 %v966
    %v1920 = vunpack.c.h.b16 %v966
    %v1921 = vunpack.c.l.b16 %v967
    %v1922 = vunpack.c.h.b16 %v967
    %v1923 = vunpack.c.l.b16 %v968
    %v1924 = vunpack.c.h.b16 %v968
    %v1925 = vunpack.c.l.b16 %v969
    %v1926 = vunpack.c.h.b16 %v969
    %v1927 = vunpack.c.l.b16 %v970
    %v1928 = vunpack.c.h.b16 %v970
    %v1929 = vunpack.c.l.b16 %v971
    %v1930 = vunpack.c.h.b16 %v971
    %v1931 = vunpack.c.l.b16 %v972
    %v1932 = vunpack.c.h.b16 %v972
    %v1933 = vunpack.c.l.b16 %v973
    %v1934 = vunpack.c.h.b16 %v973
    %v1935 = vunpack.c.l.b16 %v974
    %v1936 = vunpack.c.h.b16 %v974
    %v1937 = vunpack.c.l.b16 %v975
    %v1938 = vunpack.c.h.b16 %v975
    %v1939 = vunpack.c.l.b16 %v976
    %v1940 = vunpack.c.h.b16 %v976
    %v1941 = vunpack.c.l.b16 %v977
    %v1942 = vunpack.c.h.b16 %v977
    %v1943 = vunpack.c.l.b16 %v978
    %v1944 = vunpack.c.h.b16 %v978
    %v1945 = vunpack.c.l.b16 %v979
    %v1946 = vunpack.c.h.b16 %v979
    %v1947 = vunpack.c.l.b16 %v980
    %v1948 = vunpack.c.h.b16 %v980
    %v1949 = vunpack.c.l.b16 %v981
    %v1950 = vunpack.c.h.b16 %v981
    %v1951 = vunpack.c.l.b16 %v982
    %v1952 = vunpack.c.h.b16 %v982
    %v1953 = vunpack.c.l.b16 %v983
    %v1954 = vunpack.c.h.b16 %v983
    %v1955 = vunpack.c.l.b16 %v984
    %v1956 = vunpack.c.h.b16 %v984
    %v1957 = vunpack.c.l.b16 %v985
    %v1958 = vunpack.c.h.b16 %v985
    %v1959 = vunpack.c.l.b16 %v986
    %v1960 = vunpack.c.h.b16 %v986
    %v1961 = vunpack.c.l.b16 %v987
    %v1962 = vunpack.c.h.b16 %v987
    %v1963 = vunpack.c.l.b16 %v988
    %v1964 = vunpack.c.h.b16 %v988
    %v1965 = vunpack.c.l.b16 %v989
    %v1966 = vunpack.c.h.b16 %v989
    %v1967 = vunpack.c.l.b16 %v990
    %v1968 = vunpack.c.h.b16 %v990
    %v1969 = vunpack.c.l.b16 %v991
    %v1970 = vunpack.c.h.b16 %v991
    %v1971 = vunpack.c.l.b16 %v992
    %v1972 = vunpack.c.h.b16 %v992
    %v1973 = vunpack.c.l.b16 %v993
    %v1974 = vunpack.c.h.b16 %v993
    %v1975 = vunpack.c.l.b16 %v994
    %v1976 = vunpack.c.h.b16 %v994
    %v1977 = vunpack.c.l.b16 %v995
    %v1978 = vunpack.c.h.b16 %v995
    %v1979 = vunpack.c.l.b16 %v996
    %v1980 = vunpack.c.h.b16 %v996
    %v1981 = vunpack.c.l.b16 %v997
    %v1982 = vunpack.c.h.b16 %v997
    %v1983 = vunpack.c.l.b16 %v998
    %v1984 = vunpack.c.h.b16 %v998
    %v1985 = vunpack.c.l.b16 %v999
    %v1986 = vunpack.c.h.b16 %v999
    %v1987 = vunpack.c.l.b16 %v1000
    %v1988 = vunpack.c.h.b16 %v1000
    %v1989 = vunpack.c.l.b16 %v1001
    %v1990 = vunpack.c.h.b16 %v1001
    %v1991 = vunpack.c.l.b16 %v1002
    %v1992 = vunpack.c.h.b16 %v1002
    %v1993 = vunpack.c.l.b16 %v1003
    %v1994 = vunpack.c.h.b16 %v1003
    %v1995 = vunpack.c.l.b16 %v1004
    %v1996 = vunpack.c.h.b16 %v1004
    %v1997 = vunpack.c.l.b16 %v1005
    %v1998 = vunpack.c.h.b16 %v1005
    %v1999 = vunpack.c.l.b16 %v1006
    %v2000 = vunpack.c.h.b16 %v1006
    %v2001 = vunpack.c.l.b16 %v1007
    %v2002 = vunpack.c.h.b16 %v1007
    %v2003 = vunpack.c.l.b16 %v1008
    %v2004 = vunpack.c.h.b16 %v1008
    %v2005 = vunpack.c.l.b16 %v1009
    %v2006 = vunpack.c.h.b16 %v1009
    %v2007 = vpack.c.b16 %v1499, %v1495
    %v2008 = vpack.c.b16 %v1500, %v1496
    %v2009 = vpack.c.b16 %v1501, %v1497
    %v2010 = vpack.c.b16 %v1502, %v1498
    %v2011 = vpack.c.b16 %v1507, %v1503
    %v2012 = vpack.c.b16 %v1508, %v1504
    %v2013 = vpack.c.b16 %v1509, %v1505
    %v2014 = vpack.c.b16 %v1510, %v1506
    %v2015 = vpack.c.b16 %v1515, %v1511
    %v2016 = vpack.c.b16 %v1516, %v1512
    %v2017 = vpack.c.b16 %v1517, %v1513
    %v2018 = vpack.c.b16 %v1518, %v1514
    %v2019 = vpack.c.b16 %v1523, %v1519
    %v2020 = vpack.c.b16 %v1524, %v1520
    %v2021 = vpack.c.b16 %v1525, %v1521
    %v2022 = vpack.c.b16 %v1526, %v1522
    %v2023 = vpack.c.b16 %v1531, %v1527
    %v2024 = vpack.c.b16 %v1532, %v1528
    %v2025 = vpack.c.b16 %v1533, %v1529
    %v2026 = vpack.c.b16 %v1534, %v1530
    %v2027 = vpack.c.b16 %v1539, %v1535
    %v2028 = vpack.c.b16 %v1540, %v1536
    %v2029 = vpack.c.b16 %v1541, %v1537
    %v2030 = vpack.c.b16 %v1542, %v1538
    %v2031 = vpack.c.b16 %v1547, %v1543
    %v2032 = vpack.c.b16 %v1548, %v1544
    %v2033 = vpack.c.b16 %v1549, %v1545
    %v2034 = vpack.c.b16 %v1550, %v1546
    %v2035 = vpack.c.b16 %v1555, %v1551
    %v2036 = vpack.c.b16 %v1556, %v1552
    %v2037 = vpack.c.b16 %v1557, %v1553
    %v2038 = vpack.c.b16 %v1558, %v1554
    %v2039 = vpack.c.b16 %v1563, %v1559
    %v2040 = vpack.c.b16 %v1564, %v1560
    %v2041 = vpack.c.b16 %v1565, %v1561
    %v2042 = vpack.c.b16 %v1566, %v1562
    %v2043 = vpack.c.b16 %v1571, %v1567
    %v2044 = vpack.c.b16 %v1572, %v1568
    %v2045 = vpack.c.b16 %v1573, %v1569
    %v2046 = vpack.c.b16 %v1574, %v1570
    %v2047 = vpack.c.b16 %v1579, %v1575
    %v2048 = vpack.c.b16 %v1580, %v1576
    %v2049 = vpack.c.b16 %v1581, %v1577
    %v2050 = vpack.c.b16 %v1582, %v1578
    %v2051 = vpack.c.b16 %v1587, %v1583
    %v2052 = vpack.c.b16 %v1588, %v1584
    %v2053 = vpack.c.b16 %v1589, %v1585
    %v2054 = vpack.c.b16 %v1590, %v1586
    %v2055 = vpack.c.b16 %v1595, %v1591
    %v2056 = vpack.c.b16 %v1596, %v1592
    %v2057 = vpack.c.b16 %v1597, %v1593
    %v2058 = vpack.c.b16 %v1598, %v1594
    %v2059 = vpack.c.b16 %v1603, %v1599
    %v2060 = vpack.c.b16 %v1604, %v1600
    %v2061 = vpack.c.b16 %v1605, %v1601
    %v2062 = vpack.c.b16 %v1606, %v1602
    %v2063 = vpack.c.b16 %v1611, %v1607
    %v2064 = vpack.c.b16 %v1612, %v1608
    %v2065 = vpack.c.b16 %v1613, %v1609
    %v2066 = vpack.c.b16 %v1614, %v1610
    %v2067 = vpack.c.b16 %v1619, %v1615
    %v2068 = vpack.c.b16 %v1620, %v1616
    %v2069 = vpack.c.b16 %v1621, %v1617
    %v2070 = vpack.c.b16 %v1622, %v1618
    %v2071 = vpack.c.b16 %v1627, %v1623
    %v2072 = vpack.c.b16 %v1628, %v1624
    %v2073 = vpack.c.b16 %v1629, %v1625
    %v2074 = vpack.c.b16 %v1630, %v1626
    %v2075 = vpack.c.b16 %v1635, %v1631
    %v2076 = vpack.c.b16 %v1636, %v1632
    %v2077 = vpack.c.b16 %v1637, %v1633
    %v2078 = vpack.c.b16 %v1638, %v1634
    %v2079 = vpack.c.b16 %v1643, %v1639
    %v2080 = vpack.c.b16 %v1644, %v1640
    %v2081 = vpack.c.b16 %v1645, %v1641
    %v2082 = vpack.c.b16 %v1646, %v1642
    %v2083 = vpack.c.b16 %v1651, %v1647
    %v2084 = vpack.c.b16 %v1652, %v1648
    %v2085 = vpack.c.b16 %v1653, %v1649
    %v2086 = vpack.c.b16 %v1654, %v1650
    %v2087 = vpack.c.b16 %v1659, %v1655
    %v2088 = vpack.c.b16 %v1660, %v1656
    %v2089 = vpack.c.b16 %v1661, %v1657
    %v2090 = vpack.c.b16 %v1662, %v1658
    %v2091 = vpack.c.b16 %v1667, %v1663
    %v2092 = vpack.c.b16 %v1668, %v1664
    %v2093 = vpack.c.b16 %v1669, %v1665
    %v2094 = vpack.c.b16 %v1670, %v1666
    %v2095 = vpack.c.b16 %v1675, %v1671
    %v2096 = vpack.c.b16 %v1676, %v1672
    %v2097 = vpack.c.b16 %v1677, %v1673
    %v2098 = vpack.c.b16 %v1678, %v1674
    %v2099 = vpack.c.b16 %v1683, %v1679
    %v2100 = vpack.c.b16 %v1684, %v1680
    %v2101 = vpack.c.b16 %v1685, %v1681
    %v2102 = vpack.c.b16 %v1686, %v1682
    %v2103 = vpack.c.b16 %v1691, %v1687
    %v2104 = vpack.c.b16 %v1692, %v1688
    %v2105 = vpack.c.b16 %v1693, %v1689
    %v2106 = vpack.c.b16 %v1694, %v1690
    %v2107 = vpack.c.b16 %v1699, %v1695
    %v2108 = vpack.c.b16 %v1700, %v1696
    %v2109 = vpack.c.b16 %v1701, %v1697
    %v2110 = vpack.c.b16 %v1702, %v1698
    %v2111 = vpack.c.b16 %v1707, %v1703
    %v2112 = vpack.c.b16 %v1708, %v1704
    %v2113 = vpack.c.b16 %v1709, %v1705
    %v2114 = vpack.c.b16 %v1710, %v1706
    %v2115 = vpack.c.b16 %v1715, %v1711
    %v2116 = vpack.c.b16 %v1716, %v1712
    %v2117 = vpack.c.b16 %v1717, %v1713
    %v2118 = vpack.c.b16 %v1718, %v1714
    %v2119 = vpack.c.b16 %v1723, %v1719
    %v2120 = vpack.c.b16 %v1724, %v1720
    %v2121 = vpack.c.b16 %v1725, %v1721
    %v2122 = vpack.c.b16 %v1726, %v1722
    %v2123 = vpack.c.b16 %v1731, %v1727
    %v2124 = vpack.c.b16 %v1732, %v1728
    %v2125 = vpack.c.b16 %v1733, %v1729
    %v2126 = vpack.c.b16 %v1734, %v1730
    %v2127 = vpack.c.b16 %v1739, %v1735
    %v2128 = vpack.c.b16 %v1740, %v1736
    %v2129 = vpack.c.b16 %v1741, %v1737
    %v2130 = vpack.c.b16 %v1742, %v1738
    %v2131 = vpack.c.b16 %v1747, %v1743
    %v2132 = vpack.c.b16 %v1748, %v1744
    %v2133 = vpack.c.b16 %v1749, %v1745
    %v2134 = vpack.c.b16 %v1750, %v1746
    %v2135 = vpack.c.b16 %v1755, %v1751
    %v2136 = vpack.c.b16 %v1756, %v1752
    %v2137 = vpack.c.b16 %v1757, %v1753
    %v2138 = vpack.c.b16 %v1758, %v1754
    %v2139 = vpack.c.b16 %v1763, %v1759
    %v2140 = vpack.c.b16 %v1764, %v1760
    %v2141 = vpack.c.b16 %v1765, %v1761
    %v2142 = vpack.c.b16 %v1766, %v1762
    %v2143 = vpack.c.b16 %v1771, %v1767
    %v2144 = vpack.c.b16 %v1772, %v1768
    %v2145 = vpack.c.b16 %v1773, %v1769
    %v2146 = vpack.c.b16 %v1774, %v1770
    %v2147 = vpack.c.b16 %v1779, %v1775
    %v2148 = vpack.c.b16 %v1780, %v1776
    %v2149 = vpack.c.b16 %v1781, %v1777
    %v2150 = vpack.c.b16 %v1782, %v1778
    %v2151 = vpack.c.b16 %v1787, %v1783
    %v2152 = vpack.c.b16 %v1788, %v1784
    %v2153 = vpack.c.b16 %v1789, %v1785
    %v2154 = vpack.c.b16 %v1790, %v1786
    %v2155 = vpack.c.b16 %v1795, %v1791
    %v2156 = vpack.c.b16 %v1796, %v1792
    %v2157 = vpack.c.b16 %v1797, %v1793
    %v2158 = vpack.c.b16 %v1798, %v1794
    %v2159 = vpack.c.b16 %v1803, %v1799
    %v2160 = vpack.c.b16 %v1804, %v1800
    %v2161 = vpack.c.b16 %v1805, %v1801
    %v2162 = vpack.c.b16 %v1806, %v1802
    %v2163 = vpack.c.b16 %v1811, %v1807
    %v2164 = vpack.c.b16 %v1812, %v1808
    %v2165 = vpack.c.b16 %v1813, %v1809
    %v2166 = vpack.c.b16 %v1814, %v1810
    %v2167 = vpack.c.b16 %v1819, %v1815
    %v2168 = vpack.c.b16 %v1820, %v1816
    %v2169 = vpack.c.b16 %v1821, %v1817
    %v2170 = vpack.c.b16 %v1822, %v1818
    %v2171 = vpack.c.b16 %v1827, %v1823
    %v2172 = vpack.c.b16 %v1828, %v1824
    %v2173 = vpack.c.b16 %v1829, %v1825
    %v2174 = vpack.c.b16 %v1830, %v1826
    %v2175 = vpack.c.b16 %v1835, %v1831
    %v2176 = vpack.c.b16 %v1836, %v1832
    %v2177 = vpack.c.b16 %v1837, %v1833
    %v2178 = vpack.c.b16 %v1838, %v1834
    %v2179 = vpack.c.b16 %v1843, %v1839
    %v2180 = vpack.c.b16 %v1844, %v1840
    %v2181 = vpack.c.b16 %v1845, %v1841
    %v2182 = vpack.c.b16 %v1846, %v1842
    %v2183 = vpack.c.b16 %v1851, %v1847
    %v2184 = vpack.c.b16 %v1852, %v1848
    %v2185 = vpack.c.b16 %v1853, %v1849
    %v2186 = vpack.c.b16 %v1854, %v1850
    %v2187 = vpack.c.b16 %v1859, %v1855
    %v2188 = vpack.c.b16 %v1860, %v1856
    %v2189 = vpack.c.b16 %v1861, %v1857
    %v2190 = vpack.c.b16 %v1862, %v1858
    %v2191 = vpack.c.b16 %v1867, %v1863
    %v2192 = vpack.c.b16 %v1868, %v1864
    %v2193 = vpack.c.b16 %v1869, %v1865
    %v2194 = vpack.c.b16 %v1870, %v1866
    %v2195 = vpack.c.b16 %v1875, %v1871
    %v2196 = vpack.c.b16 %v1876, %v1872
    %v2197 = vpack.c.b16 %v1877, %v1873
    %v2198 = vpack.c.b16 %v1878, %v1874
    %v2199 = vpack.c.b16 %v1883, %v1879
    %v2200 = vpack.c.b16 %v1884, %v1880
    %v2201 = vpack.c.b16 %v1885, %v1881
    %v2202 = vpack.c.b16 %v1886, %v1882
    %v2203 = vpack.c.b16 %v1891, %v1887
    %v2204 = vpack.c.b16 %v1892, %v1888
    %v2205 = vpack.c.b16 %v1893, %v1889
    %v2206 = vpack.c.b16 %v1894, %v1890
    %v2207 = vpack.c.b16 %v1899, %v1895
    %v2208 = vpack.c.b16 %v1900, %v1896
    %v2209 = vpack.c.b16 %v1901, %v1897
    %v2210 = vpack.c.b16 %v1902, %v1898
    %v2211 = vpack.c.b16 %v1907, %v1903
    %v2212 = vpack.c.b16 %v1908, %v1904
    %v2213 = vpack.c.b16 %v1909, %v1905
    %v2214 = vpack.c.b16 %v1910, %v1906
    %v2215 = vpack.c.b16 %v1915, %v1911
    %v2216 = vpack.c.b16 %v1916, %v1912
    %v2217 = vpack.c.b16 %v1917, %v1913
    %v2218 = vpack.c.b16 %v1918, %v1914
    %v2219 = vpack.c.b16 %v1923, %v1919
    %v2220 = vpack.c.b16 %v1924, %v1920
    %v2221 = vpack.c.b16 %v1925, %v1921
    %v2222 = vpack.c.b16 %v1926, %v1922
    %v2223 = vpack.c.b16 %v1931, %v1927
    %v2224 = vpack.c.b16 %v1932, %v1928
    %v2225 = vpack.c.b16 %v1933, %v1929
    %v2226 = vpack.c.b16 %v1934, %v1930
    %v2227 = vpack.c.b16 %v1939, %v1935
    %v2228 = vpack.c.b16 %v1940, %v1936
    %v2229 = vpack.c.b16 %v1941, %v1937
    %v2230 = vpack.c.b16 %v1942, %v1938
    %v2231 = vpack.c.b16 %v1947, %v1943
    %v2232 = vpack.c.b16 %v1948, %v1944
    %v2233 = vpack.c.b16 %v1949, %v1945
    %v2234 = vpack.c.b16 %v1950, %v1946
    %v2235 = vpack.c.b16 %v1955, %v1951
    %v2236 = vpack.c.b16 %v1956, %v1952
    %v2237 = vpack.c.b16 %v1957, %v1953
    %v2238 = vpack.c.b16 %v1958, %v1954
    %v2239 = vpack.c.b16 %v1963, %v1959
    %v2240 = vpack.c.b16 %v1964, %v1960
    %v2241 = vpack.c.b16 %v1965, %v1961
    %v2242 = vpack.c.b16 %v1966, %v1962
    %v2243 = vpack.c.b16 %v1971, %v1967
    %v2244 = vpack.c.b16 %v1972, %v1968
    %v2245 = vpack.c.b16 %v1973, %v1969
    %v2246 = vpack.c.b16 %v1974, %v1970
    %v2247 = vpack.c.b16 %v1979, %v1975
    %v2248 = vpack.c.b16 %v1980, %v1976
    %v2249 = vpack.c.b16 %v1981, %v1977
    %v2250 = vpack.c.b16 %v1982, %v1978
    %v2251 = vpack.c.b16 %v1987, %v1983
    %v2252 = vpack.c.b16 %v1988, %v1984
    %v2253 = vpack.c.b16 %v1989, %v1985
    %v2254 = vpack.c.b16 %v1990, %v1986
    %v2255 = vpack.c.b16 %v1995, %v1991
    %v2256 = vpack.c.b16 %v1996, %v1992
    %v2257 = vpack.c.b16 %v1997, %v1993
    %v2258 = vpack.c.b16 %v1998, %v1994
    %v2259 = vpack.c.b16 %v2003, %v1999
    %v2260 = vpack.c.b16 %v2004, %v2000
    %v2261 = vpack.c.b16 %v2005, %v2001
    %v2262 = vpack.c.b16 %v2006, %v2002
    %2519 = vmatprep.subr.bf16.mxu0 %v2008
    %2520 = vmatpush1.bf16.msra.mxu0 %v2007
    %2521 = vmatprep.subr.bf16.mxu0 %v2012
    %2522 = vmatpush1.bf16.msra.mxu0 %v2011
    %2523 = vmatprep.subr.bf16.mxu0 %v2016
    %2524 = vmatpush1.bf16.msra.mxu0 %v2015
    %2525 = vmatprep.subr.bf16.mxu0 %v2020
    %2526 = vmatpush1.bf16.msra.mxu0 %v2019
    %2527 = vmatprep.subr.bf16.mxu0 %v2024
    %2528 = vmatpush1.bf16.msra.mxu0 %v2023
    %2529 = vmatprep.subr.bf16.mxu0 %v2028
    %2530 = vmatpush1.bf16.msra.mxu0 %v2027
    %2531 = vmatprep.subr.bf16.mxu0 %v2032
    %2532 = vmatpush1.bf16.msra.mxu0 %v2031
    %2533 = vmatprep.subr.bf16.mxu0 %v2036
    %2534 = vmatpush1.bf16.msra.mxu0 %v2035
    %2535 = vmatprep.subr.bf16.mxu0 %v2040
    %2536 = vmatpush1.bf16.msra.mxu0 %v2039
    %2537 = vmatprep.subr.bf16.mxu0 %v2044
    %2538 = vmatpush1.bf16.msra.mxu0 %v2043
    %2539 = vmatprep.subr.bf16.mxu0 %v2048
    %2540 = vmatpush1.bf16.msra.mxu0 %v2047
    %2541 = vmatprep.subr.bf16.mxu0 %v2052
    %2542 = vmatpush1.bf16.msra.mxu0 %v2051
    %2543 = vmatprep.subr.bf16.mxu0 %v2056
    %2544 = vmatpush1.bf16.msra.mxu0 %v2055
    %2545 = vmatprep.subr.bf16.mxu0 %v2060
    %2546 = vmatpush1.bf16.msra.mxu0 %v2059
    %2547 = vmatprep.subr.bf16.mxu0 %v2064
    %2548 = vmatpush1.bf16.msra.mxu0 %v2063
    %2549 = vmatprep.subr.bf16.mxu0 %v2068
    %2550 = vmatpush1.bf16.msra.mxu0 %v2067
    %2551 = vmatprep.mubr.bf16.mxu0 %v1224
    %2552 = vmatmul.mubr.bf16.gmra.mrb[0].mxu0 %v1223
    %v2553 = vpop.f32.mrb[0].mxu0
    %v2554 = vadd.f32 %v1015, %v2553
    %v2555 = vpop.f32.mrb[0].mxu0
    %v2556 = vadd.f32 %v1019, %v2555
    %v2557 = vpop.f32.mrb[0].mxu0
    %v2558 = vpop.f32.mrb[0].mxu0
    %2559 = vdwg.mxu0
    %2560 = vmatprep.subr.bf16.mxu0 %v2072
    %2561 = vmatpush1.bf16.msra.mxu0 %v2071
    %2562 = vmatprep.subr.bf16.mxu0 %v2076
    %2563 = vmatpush1.bf16.msra.mxu0 %v2075
    %2564 = vmatprep.subr.bf16.mxu0 %v2080
    %2565 = vmatpush1.bf16.msra.mxu0 %v2079
    %2566 = vmatprep.subr.bf16.mxu0 %v2084
    %2567 = vmatpush1.bf16.msra.mxu0 %v2083
    %2568 = vmatprep.subr.bf16.mxu0 %v2088
    %2569 = vmatpush1.bf16.msra.mxu0 %v2087
    %2570 = vmatprep.subr.bf16.mxu0 %v2092
    %2571 = vmatpush1.bf16.msra.mxu0 %v2091
    %2572 = vmatprep.subr.bf16.mxu0 %v2096
    %2573 = vmatpush1.bf16.msra.mxu0 %v2095
    %2574 = vmatprep.subr.bf16.mxu0 %v2100
    %2575 = vmatpush1.bf16.msra.mxu0 %v2099
    %2576 = vmatprep.subr.bf16.mxu0 %v2104
    %2577 = vmatpush1.bf16.msra.mxu0 %v2103
    %2578 = vmatprep.subr.bf16.mxu0 %v2108
    %2579 = vmatpush1.bf16.msra.mxu0 %v2107
    %2580 = vmatprep.subr.bf16.mxu0 %v2112
    %2581 = vmatpush1.bf16.msra.mxu0 %v2111
    %2582 = vmatprep.subr.bf16.mxu0 %v2116
    %2583 = vmatpush1.bf16.msra.mxu0 %v2115
    %2584 = vmatprep.subr.bf16.mxu0 %v2120
    %2585 = vmatpush1.bf16.msra.mxu0 %v2119
    %2586 = vmatprep.subr.bf16.mxu0 %v2124
    %2587 = vmatpush1.bf16.msra.mxu0 %v2123
    %2588 = vmatprep.subr.bf16.mxu0 %v2128
    %2589 = vmatpush1.bf16.msra.mxu0 %v2127
    %2590 = vmatprep.subr.bf16.mxu0 %v2132
    %2591 = vmatpush1.bf16.msra.mxu0 %v2131
    %2592 = vmatprep.mubr.bf16.mxu0 %v1226
    %2593 = vmatmul.mubr.bf16.gmra.mrb[0].mxu0 %v1225
    %v2594 = vpop.f32.mrb[0].mxu0
    %v2595 = vadd.f32 %v2554, %v2594
    %v2596 = vpop.f32.mrb[0].mxu0
    %v2597 = vadd.f32 %v2556, %v2596
    %v2598 = vpop.f32.mrb[0].mxu0
    %v2599 = vpop.f32.mrb[0].mxu0
    %2600 = vdwg.mxu0
    %2601 = vmatprep.subr.bf16.mxu0 %v2136
    %2602 = vmatpush1.bf16.msra.mxu0 %v2135
    %2603 = vmatprep.subr.bf16.mxu0 %v2140
    %2604 = vmatpush1.bf16.msra.mxu0 %v2139
    %2605 = vmatprep.subr.bf16.mxu0 %v2144
    %2606 = vmatpush1.bf16.msra.mxu0 %v2143
    %2607 = vmatprep.subr.bf16.mxu0 %v2148
    %2608 = vmatpush1.bf16.msra.mxu0 %v2147
    %2609 = vmatprep.subr.bf16.mxu0 %v2152
    %2610 = vmatpush1.bf16.msra.mxu0 %v2151
    %2611 = vmatprep.subr.bf16.mxu0 %v2156
    %2612 = vmatpush1.bf16.msra.mxu0 %v2155
    %2613 = vmatprep.subr.bf16.mxu0 %v2160
    %2614 = vmatpush1.bf16.msra.mxu0 %v2159
    %2615 = vmatprep.subr.bf16.mxu0 %v2164
    %2616 = vmatpush1.bf16.msra.mxu0 %v2163
    %2617 = vmatprep.subr.bf16.mxu0 %v2168
    %2618 = vmatpush1.bf16.msra.mxu0 %v2167
    %2619 = vmatprep.subr.bf16.mxu0 %v2172
    %2620 = vmatpush1.bf16.msra.mxu0 %v2171
    %2621 = vmatprep.subr.bf16.mxu0 %v2176
    %2622 = vmatpush1.bf16.msra.mxu0 %v2175
    %2623 = vmatprep.subr.bf16.mxu0 %v2180
    %2624 = vmatpush1.bf16.msra.mxu0 %v2179
    %2625 = vmatprep.subr.bf16.mxu0 %v2184
    %2626 = vmatpush1.bf16.msra.mxu0 %v2183
    %2627 = vmatprep.subr.bf16.mxu0 %v2188
    %2628 = vmatpush1.bf16.msra.mxu0 %v2187
    %2629 = vmatprep.subr.bf16.mxu0 %v2192
    %2630 = vmatpush1.bf16.msra.mxu0 %v2191
    %2631 = vmatprep.subr.bf16.mxu0 %v2196
    %2632 = vmatpush1.bf16.msra.mxu0 %v2195
    %2633 = vmatprep.mubr.bf16.mxu0 %v1228
    %2634 = vmatmul.mubr.bf16.gmra.mrb[0].mxu0 %v1227
    %v2635 = vpop.f32.mrb[0].mxu0
    %v2636 = vadd.f32 %v2595, %v2635
    %v2637 = vpop.f32.mrb[0].mxu0
    %v2638 = vadd.f32 %v2597, %v2637
    %v2639 = vpop.f32.mrb[0].mxu0
    %v2640 = vpop.f32.mrb[0].mxu0
    %2641 = vdwg.mxu0
    %2642 = vmatprep.subr.bf16.mxu0 %v2200
    %2643 = vmatpush1.bf16.msra.mxu0 %v2199
    %2644 = vmatprep.subr.bf16.mxu0 %v2204
    %2645 = vmatpush1.bf16.msra.mxu0 %v2203
    %2646 = vmatprep.subr.bf16.mxu0 %v2208
    %2647 = vmatpush1.bf16.msra.mxu0 %v2207
    %2648 = vmatprep.subr.bf16.mxu0 %v2212
    %2649 = vmatpush1.bf16.msra.mxu0 %v2211
    %2650 = vmatprep.subr.bf16.mxu0 %v2216
    %2651 = vmatpush1.bf16.msra.mxu0 %v2215
    %2652 = vmatprep.subr.bf16.mxu0 %v2220
    %2653 = vmatpush1.bf16.msra.mxu0 %v2219
    %2654 = vmatprep.subr.bf16.mxu0 %v2224
    %2655 = vmatpush1.bf16.msra.mxu0 %v2223
    %2656 = vmatprep.subr.bf16.mxu0 %v2228
    %2657 = vmatpush1.bf16.msra.mxu0 %v2227
    %2658 = vmatprep.subr.bf16.mxu0 %v2232
    %2659 = vmatpush1.bf16.msra.mxu0 %v2231
    %2660 = vmatprep.subr.bf16.mxu0 %v2236
    %2661 = vmatpush1.bf16.msra.mxu0 %v2235
    %2662 = vmatprep.subr.bf16.mxu0 %v2240
    %2663 = vmatpush1.bf16.msra.mxu0 %v2239
    %2664 = vmatprep.subr.bf16.mxu0 %v2244
    %2665 = vmatpush1.bf16.msra.mxu0 %v2243
    %2666 = vmatprep.subr.bf16.mxu0 %v2248
    %2667 = vmatpush1.bf16.msra.mxu0 %v2247
    %2668 = vmatprep.subr.bf16.mxu0 %v2252
    %2669 = vmatpush1.bf16.msra.mxu0 %v2251
    %2670 = vmatprep.subr.bf16.mxu0 %v2256
    %2671 = vmatpush1.bf16.msra.mxu0 %v2255
    %2672 = vmatprep.subr.bf16.mxu0 %v2260
    %2673 = vmatpush1.bf16.msra.mxu0 %v2259
    %2674 = vmatprep.mubr.bf16.mxu0 %v1230
    %2675 = vmatmul.mubr.bf16.gmra.mrb[0].mxu0 %v1229
    %v2676 = vpop.f32.mrb[0].mxu0
    %v2677 = vadd.f32 %v2636, %v2676
    %v2678 = vpop.f32.mrb[0].mxu0
    %v2679 = vadd.f32 %v2638, %v2678
    %v2680 = vpop.f32.mrb[0].mxu0
    %v2681 = vpop.f32.mrb[0].mxu0
    %2682 = vdwg.mxu0
    %2683 = vmatprep.subr.bf16.mxu0 %v2010
    %2684 = vmatpush1.bf16.msra.mxu0 %v2009
    %2685 = vmatprep.subr.bf16.mxu0 %v2014
    %2686 = vmatpush1.bf16.msra.mxu0 %v2013
    %2687 = vmatprep.subr.bf16.mxu0 %v2018
    %2688 = vmatpush1.bf16.msra.mxu0 %v2017
    %2689 = vmatprep.subr.bf16.mxu0 %v2022
    %2690 = vmatpush1.bf16.msra.mxu0 %v2021
    %2691 = vmatprep.subr.bf16.mxu0 %v2026
    %2692 = vmatpush1.bf16.msra.mxu0 %v2025
    %2693 = vmatprep.subr.bf16.mxu0 %v2030
    %2694 = vmatpush1.bf16.msra.mxu0 %v2029
    %2695 = vmatprep.subr.bf16.mxu0 %v2034
    %2696 = vmatpush1.bf16.msra.mxu0 %v2033
    %2697 = vmatprep.subr.bf16.mxu0 %v2038
    %2698 = vmatpush1.bf16.msra.mxu0 %v2037
    %2699 = vmatprep.subr.bf16.mxu0 %v2042
    %2700 = vmatpush1.bf16.msra.mxu0 %v2041
    %2701 = vmatprep.subr.bf16.mxu0 %v2046
    %2702 = vmatpush1.bf16.msra.mxu0 %v2045
    %2703 = vmatprep.subr.bf16.mxu0 %v2050
    %2704 = vmatpush1.bf16.msra.mxu0 %v2049
    %2705 = vmatprep.subr.bf16.mxu0 %v2054
    %2706 = vmatpush1.bf16.msra.mxu0 %v2053
    %2707 = vmatprep.subr.bf16.mxu0 %v2058
    %2708 = vmatpush1.bf16.msra.mxu0 %v2057
    %2709 = vmatprep.subr.bf16.mxu0 %v2062
    %2710 = vmatpush1.bf16.msra.mxu0 %v2061
    %2711 = vmatprep.subr.bf16.mxu0 %v2066
    %2712 = vmatpush1.bf16.msra.mxu0 %v2065
    %2713 = vmatprep.subr.bf16.mxu0 %v2070
    %2714 = vmatpush1.bf16.msra.mxu0 %v2069
    %2715 = vmatprep.mubr.bf16.mxu0 %v1224
    %2716 = vmatmul.mubr.bf16.gmra.mrb[0].mxu0 %v1223
    %v2717 = vpop.f32.mrb[0].mxu0
    %v2718 = vadd.f32 %v1023, %v2717
    %v2719 = vpop.f32.mrb[0].mxu0
    %v2720 = vadd.f32 %v1027, %v2719
    %v2721 = vpop.f32.mrb[0].mxu0
    %v2722 = vpop.f32.mrb[0].mxu0
    %2723 = vdwg.mxu0
    %2724 = vmatprep.subr.bf16.mxu0 %v2074
    %2725 = vmatpush1.bf16.msra.mxu0 %v2073
    %2726 = vmatprep.subr.bf16.mxu0 %v2078
    %2727 = vmatpush1.bf16.msra.mxu0 %v2077
    %2728 = vmatprep.subr.bf16.mxu0 %v2082
    %2729 = vmatpush1.bf16.msra.mxu0 %v2081
    %2730 = vmatprep.subr.bf16.mxu0 %v2086
    %2731 = vmatpush1.bf16.msra.mxu0 %v2085
    %2732 = vmatprep.subr.bf16.mxu0 %v2090
    %2733 = vmatpush1.bf16.msra.mxu0 %v2089
    %2734 = vmatprep.subr.bf16.mxu0 %v2094
    %2735 = vmatpush1.bf16.msra.mxu0 %v2093
    %2736 = vmatprep.subr.bf16.mxu0 %v2098
    %2737 = vmatpush1.bf16.msra.mxu0 %v2097
    %2738 = vmatprep.subr.bf16.mxu0 %v2102
    %2739 = vmatpush1.bf16.msra.mxu0 %v2101
    %2740 = vmatprep.subr.bf16.mxu0 %v2106
    %2741 = vmatpush1.bf16.msra.mxu0 %v2105
    %2742 = vmatprep.subr.bf16.mxu0 %v2110
    %2743 = vmatpush1.bf16.msra.mxu0 %v2109
    %2744 = vmatprep.subr.bf16.mxu0 %v2114
    %2745 = vmatpush1.bf16.msra.mxu0 %v2113
    %2746 = vmatprep.subr.bf16.mxu0 %v2118
    %2747 = vmatpush1.bf16.msra.mxu0 %v2117
    %2748 = vmatprep.subr.bf16.mxu0 %v2122
    %2749 = vmatpush1.bf16.msra.mxu0 %v2121
    %2750 = vmatprep.subr.bf16.mxu0 %v2126
    %2751 = vmatpush1.bf16.msra.mxu0 %v2125
    %2752 = vmatprep.subr.bf16.mxu0 %v2130
    %2753 = vmatpush1.bf16.msra.mxu0 %v2129
    %2754 = vmatprep.subr.bf16.mxu0 %v2134
    %2755 = vmatpush1.bf16.msra.mxu0 %v2133
    %2756 = vmatprep.mubr.bf16.mxu0 %v1226
    %2757 = vmatmul.mubr.bf16.gmra.mrb[0].mxu0 %v1225
    %v2758 = vpop.f32.mrb[0].mxu0
    %v2759 = vadd.f32 %v2718, %v2758
    %v2760 = vpop.f32.mrb[0].mxu0
    %v2761 = vadd.f32 %v2720, %v2760
    %v2762 = vpop.f32.mrb[0].mxu0
    %v2763 = vpop.f32.mrb[0].mxu0
    %2764 = vdwg.mxu0
    %2765 = vmatprep.subr.bf16.mxu0 %v2138
    %2766 = vmatpush1.bf16.msra.mxu0 %v2137
    %2767 = vmatprep.subr.bf16.mxu0 %v2142
    %2768 = vmatpush1.bf16.msra.mxu0 %v2141
    %2769 = vmatprep.subr.bf16.mxu0 %v2146
    %2770 = vmatpush1.bf16.msra.mxu0 %v2145
    %2771 = vmatprep.subr.bf16.mxu0 %v2150
    %2772 = vmatpush1.bf16.msra.mxu0 %v2149
    %2773 = vmatprep.subr.bf16.mxu0 %v2154
    %2774 = vmatpush1.bf16.msra.mxu0 %v2153
    %2775 = vmatprep.subr.bf16.mxu0 %v2158
    %2776 = vmatpush1.bf16.msra.mxu0 %v2157
    %2777 = vmatprep.subr.bf16.mxu0 %v2162
    %2778 = vmatpush1.bf16.msra.mxu0 %v2161
    %2779 = vmatprep.subr.bf16.mxu0 %v2166
    %2780 = vmatpush1.bf16.msra.mxu0 %v2165
    %2781 = vmatprep.subr.bf16.mxu0 %v2170
    %2782 = vmatpush1.bf16.msra.mxu0 %v2169
    %2783 = vmatprep.subr.bf16.mxu0 %v2174
    %2784 = vmatpush1.bf16.msra.mxu0 %v2173
    %2785 = vmatprep.subr.bf16.mxu0 %v2178
    %2786 = vmatpush1.bf16.msra.mxu0 %v2177
    %2787 = vmatprep.subr.bf16.mxu0 %v2182
    %2788 = vmatpush1.bf16.msra.mxu0 %v2181
    %2789 = vmatprep.subr.bf16.mxu0 %v2186
    %2790 = vmatpush1.bf16.msra.mxu0 %v2185
    %2791 = vmatprep.subr.bf16.mxu0 %v2190
    %2792 = vmatpush1.bf16.msra.mxu0 %v2189
    %2793 = vmatprep.subr.bf16.mxu0 %v2194
    %2794 = vmatpush1.bf16.msra.mxu0 %v2193
    %2795 = vmatprep.subr.bf16.mxu0 %v2198
    %2796 = vmatpush1.bf16.msra.mxu0 %v2197
    %2797 = vmatprep.mubr.bf16.mxu0 %v1228
    %2798 = vmatmul.mubr.bf16.gmra.mrb[0].mxu0 %v1227
    %v2799 = vpop.f32.mrb[0].mxu0
    %v2800 = vadd.f32 %v2759, %v2799
    %v2801 = vpop.f32.mrb[0].mxu0
    %v2802 = vadd.f32 %v2761, %v2801
    %v2803 = vpop.f32.mrb[0].mxu0
    %v2804 = vpop.f32.mrb[0].mxu0
    %2805 = vdwg.mxu0
    %2806 = vmatprep.subr.bf16.mxu0 %v2202
    %2807 = vmatpush1.bf16.msra.mxu0 %v2201
    %2808 = vmatprep.subr.bf16.mxu0 %v2206
    %2809 = vmatpush1.bf16.msra.mxu0 %v2205
    %2810 = vmatprep.subr.bf16.mxu0 %v2210
    %2811 = vmatpush1.bf16.msra.mxu0 %v2209
    %2812 = vmatprep.subr.bf16.mxu0 %v2214
    %2813 = vmatpush1.bf16.msra.mxu0 %v2213
    %2814 = vmatprep.subr.bf16.mxu0 %v2218
    %2815 = vmatpush1.bf16.msra.mxu0 %v2217
    %2816 = vmatprep.subr.bf16.mxu0 %v2222
    %2817 = vmatpush1.bf16.msra.mxu0 %v2221
    %2818 = vmatprep.subr.bf16.mxu0 %v2226
    %2819 = vmatpush1.bf16.msra.mxu0 %v2225
    %2820 = vmatprep.subr.bf16.mxu0 %v2230
    %2821 = vmatpush1.bf16.msra.mxu0 %v2229
    %2822 = vmatprep.subr.bf16.mxu0 %v2234
    %2823 = vmatpush1.bf16.msra.mxu0 %v2233
    %2824 = vmatprep.subr.bf16.mxu0 %v2238
    %2825 = vmatpush1.bf16.msra.mxu0 %v2237
    %2826 = vmatprep.subr.bf16.mxu0 %v2242
    %2827 = vmatpush1.bf16.msra.mxu0 %v2241
    %2828 = vmatprep.subr.bf16.mxu0 %v2246
    %2829 = vmatpush1.bf16.msra.mxu0 %v2245
    %2830 = vmatprep.subr.bf16.mxu0 %v2250
    %2831 = vmatpush1.bf16.msra.mxu0 %v2249
    %2832 = vmatprep.subr.bf16.mxu0 %v2254
    %2833 = vmatpush1.bf16.msra.mxu0 %v2253
    %2834 = vmatprep.subr.bf16.mxu0 %v2258
    %2835 = vmatpush1.bf16.msra.mxu0 %v2257
    %2836 = vmatprep.subr.bf16.mxu0 %v2262
    %2837 = vmatpush1.bf16.msra.mxu0 %v2261
    %2838 = vmatprep.mubr.bf16.mxu0 %v1230
    %2839 = vmatmul.mubr.bf16.gmra.mrb[0].mxu0 %v1229
    %v2840 = vpop.f32.mrb[0].mxu0
    %v2841 = vadd.f32 %v2800, %v2840
    %v2842 = vpop.f32.mrb[0].mxu0
    %v2843 = vadd.f32 %v2802, %v2842
    %v2844 = vpop.f32.mrb[0].mxu0
    %v2845 = vpop.f32.mrb[0].mxu0
    %2846 = vdwg.mxu0
    %v2847 = vmax.f32 %v2677, 0.0
    %v2848 = vmax.f32 %v2679, 0.0
    %v2849 = vmax.f32 %v2841, 0.0
    %v2850 = vmax.f32 %v2843, 0.0
    %v2851 = vld [vmem:[%s3] sm:$0xf]
    %v2853 = vlaneseq
    %v2854 = vshrl.u32 %v2853, 7
    %v2855 = vsub.s32 0, %v2854
    %v2856 = vrot.slane %v2851, %v2855
    %v2857 = vlaneseq
    %v2858 = vshrl.u32 %v2857, 7
    %v2859 = vsub.s32 1, %v2858
    %v2860 = vrot.slane %v2851, %v2859
    %v2861 = vlaneseq
    %v2862 = vshrl.u32 %v2861, 7
    %v2863 = vsub.s32 2, %v2862
    %v2864 = vrot.slane %v2851, %v2863
    %v2865 = vlaneseq
    %v2866 = vshrl.u32 %v2865, 7
    %v2867 = vsub.s32 3, %v2866
    %v2868 = vrot.slane %v2851, %v2867
    %v2873 = vmul.f32 %v2847, %v2856
    %v2874 = vmul.f32 %v2848, %v2860
    %v2875 = vmul.f32 %v2849, %v2864
    %v2876 = vmul.f32 %v2850, %v2868
    %v2877 = vadd.f32 %v2873, %v2874
    %v2878 = vadd.f32 %v2877, %v2875
    %v2879 = vadd.f32 %v2878, %v2876
    %2880 = vadd.xlane.f32.xlu0 %v2879
    %v2881 = vpop.xlane.xlu0 %2880
    %v2882 = vld [vmem:[#allocation2] sm:$0x1]
    %v2884 = vlaneseq
    %v2885 = vshrl.u32 %v2884, 7
    %v2886 = vsub.s32 0, %v2885
    %v2887 = vrot.slane %v2882, %v2886
    %v2889 = vadd.f32 %v2881, %v2887
    %v2890 = vxor.u32 %v2889, 2147483648
    %v2891 = vmul.f32 %v2890, 1.442695
    %v2892 = vpow.pop %v2891
    %v2893 = vadd.f32 %v2892, 1.0
    %v2894 = vrcp.pop %v2893
    %v2895 = vmul.f32 1.0, %v2894
    %vm2896 = vcmask 7168
    %2897 = vst.msk [vmem:[%s5] sm:$0xff] %vm2896, %v2895
    // Predicated region
    $region30: #{tpu_custom_call.1} parent=1 // pred_check
      _
    $region31: #{tpu_custom_call.1} parent=1 // pred_check_branch
      %2899 = sbr.rel (0) target = $region33
    $region32: #{tpu_custom_call.1} parent=1 // pred_region
      _
    $region33: #{tpu_custom_call.1} parent=1 // pred_fallthru
      _
    // Predicated region
    $region34: #{tpu_custom_call.1} parent=1 // pred_check
      _
    $region35: #{tpu_custom_call.1} parent=1 // pred_check_branch
      %2901 = sbr.rel (0) target = $region37
    $region36: #{tpu_custom_call.1} parent=1 // pred_region
      _
    $region37: #{tpu_custom_call.1} parent=1 // pred_fallthru
      _
    %2902 = vsyncpa [#allocation4], 1
    %2903 = vsyncpa [#allocation6], 1

</llo_original>
